<compile_context>
chip_gen: v7x
topology: tpu7x:2x2x1
jax: 0.10.0
libtpu: 0.0.40
codegen_flags: <defaults>
</compile_context>

<pallas_src>
import numpy as np
import jax
import jax.numpy as jnp
from jax.experimental import pallas as pl
from jax.experimental.pallas import tpu as pltpu

# Config (len_out = B + 1 must divide T*B -> T=8, B=7 works).
DEC_HIDDEN = 32           # dec_hidden_size
NZ = 16                   # Nz
M = 5                     # GMM mixture components
T = 8                     # sequence length
B = 7                     # batch size
IN_FEAT = NZ + 5          # 21
N_PARAMS = 6 * M + 3      # 33

# Padded / packed geometry
B_PAD = 8                 # batch padded to the sublane quantum
IN_PAD = 24               # Nz+5 padded to a multiple of 8
LANES = 128               # lane-dense width for the packed weights / output
TB = T * B_PAD            # 64 rows for the batched projection / fc head

# Row offsets in the packed weight blob (every block starts 8-row aligned)
R_HC, R_IH, R_HH, R_WP = 0, 16, 40, 72          # w_hc(16) | w_ih(24) | w_hh(32) | w_p(32)
R_BHC, R_BL, R_BP = 104, 105, 106               # b_hc | b_ih+b_hh | b_p
WROWS = 112


def _decoder_kernel(x_ref, z_ref, wb_ref, out_ref, x_pad, z_pad, h_scratch):
    H = DEC_HIDDEN

    # --- fused input padding: raw (T,B,21)/(B,16) -> aligned VMEM scratch -----
    x_pad[...] = jnp.zeros_like(x_pad)      # zero the pad lanes/rows (avoid NaN*0)
    z_pad[...] = jnp.zeros_like(z_pad)
    z_pad[0:B, :] = z_ref[...]                                     # (7,16) masked store
    for t in range(T):
        x_pad[t * B_PAD:t * B_PAD + B, 0:IN_FEAT] = x_ref[t]       # (7,21) masked store

    # --- weights needed before / inside the recurrence (fc head loads deferred)
    w_hc = wb_ref[R_HC:R_HC + NZ, :]            # (16, 128)  cols 0:2H valid
    w_ih = wb_ref[R_IH:R_IH + IN_PAD, :]        # (24, 128)  rows 21:24 zero
    w_hh = wb_ref[R_HH:R_HH + H, :]             # (32, 128)
    b_hc = wb_ref[R_BHC:R_BHC + 1, :]           # (1, 128)
    b_lstm = wb_ref[R_BL:R_BL + 1, :]           # (1, 128)   b_ih + b_hh

    # --- fc_hc: (h0, c0) = split(tanh(z @ W_hc + b_hc), H) -------------------
    hc = jnp.tanh(jnp.dot(z_pad[...], w_hc,
                          preferred_element_type=jnp.float32) + b_hc)  # (B_PAD, 128)
    h = hc[:, 0:H]
    c = hc[:, H:2 * H]

    # --- hoisted input projection: one matmul for all timesteps --------------
    x_proj = jnp.dot(x_pad[...], w_ih,
                     preferred_element_type=jnp.float32) + b_lstm      # (TB, 4H)

    # Hoisted helpers for the one-EUP-op gate activation:
    # sigmoid(x) = 0.5*tanh(0.5*x)+0.5 ; g-gate lanes keep scale 1.0 (plain tanh).
    lane_g = jax.lax.broadcasted_iota(jnp.int32, (B_PAD, 4 * H), 1)
    g_mask = (lane_g >= 2 * H) & (lane_g < 3 * H)
    gate_scale = jnp.where(g_mask, 1.0, 0.5)

    # --- serial LSTM recurrence: h @ W_hh + 2 EUP ops per step ----------------
    for t in range(T):
        gates = x_proj[t * B_PAD:(t + 1) * B_PAD, :] + jnp.dot(
            h, w_hh, preferred_element_type=jnp.float32)               # (B_PAD, 4H)
        t_all = jnp.tanh(gates * gate_scale)            # ONE full-vreg EUP pass
        acts = jnp.where(g_mask, t_all, 0.5 * t_all + 0.5)
        i_g = acts[:, 0 * H:1 * H]
        f_g = acts[:, 1 * H:2 * H]
        g_g = acts[:, 2 * H:3 * H]
        o_g = acts[:, 3 * H:4 * H]
        c = f_g * c + i_g * g_g
        h = o_g * jnp.tanh(c)                           # second (small) EUP pass
        h_scratch[t * B_PAD:(t + 1) * B_PAD, :] = h     # aligned store

    # --- batched fc_params head (weights loaded only here, after the loop) ---
    w_p = wb_ref[R_WP:R_WP + H, :]              # (32, 128)  cols 0:33 valid (permuted)
    b_p = wb_ref[R_BP:R_BP + 1, :]              # (1, 128)
    y = jnp.dot(h_scratch[...], w_p,
                preferred_element_type=jnp.float32) + b_p              # (TB, 128)

    # Column layout (pre-permuted in the wrapper):
    # [pi(5) | mu_x(5) | mu_y(5) | sigma_x(5) | sigma_y(5) | rho(5) | pen(3) | 0-pad]
    lane = jax.lax.broadcasted_iota(jnp.int32, (TB, LANES), 1)
    pi_mask = lane < M
    exp_mask = (lane >= 3 * M) & (lane < 5 * M)     # sigma_x, sigma_y
    tanh_mask = (lane >= 5 * M) & (lane < 6 * M)    # rho_xy
    q_mask = (lane >= 6 * M) & (lane < 6 * M + 3)   # pen

    # ONE exp pass shared by the sigma lanes (shift = 0 there -> exact exp(y))
    # and both softmax numerators (per-group max shift keeps f32 stability).
    pi_max = jnp.max(jnp.where(pi_mask, y, -jnp.inf), axis=-1, keepdims=True)
    q_max = jnp.max(jnp.where(q_mask, y, -jnp.inf), axis=-1, keepdims=True)
    shift = jnp.where(pi_mask, pi_max, jnp.where(q_mask, q_max, 0.0))
    e = jnp.exp(y - shift)                          # ONE exp over (TB, 128)
    t_y = jnp.tanh(y)                               # ONE tanh over (TB, 128)

    pi_sum = jnp.sum(jnp.where(pi_mask, e, 0.0), axis=-1, keepdims=True)
    q_sum = jnp.sum(jnp.where(q_mask, e, 0.0), axis=-1, keepdims=True)

    out = jnp.where(exp_mask, e, y)
    out = jnp.where(tanh_mask, t_y, out)
    out = jnp.where(pi_mask, e * pl.reciprocal(pi_sum, approx=True), out)
    out = jnp.where(q_mask, e * pl.reciprocal(q_sum, approx=True), out)

    out_ref[...] = out                              # one lane-dense store


def init_params(key):
    """Deterministic synthetic parameters with PyTorch-like shapes."""
    def uniform(k, shape, fan_in):
        bound = 1.0 / jnp.sqrt(jnp.float32(fan_in))
        return jax.random.uniform(k, shape, jnp.float32, -bound, bound)

    ks = jax.random.split(key, 8)
    H = DEC_HIDDEN
    return {
        "fc_hc_w": uniform(ks[0], (2 * H, NZ), NZ),        # torch Linear: (out, in)
        "fc_hc_b": uniform(ks[1], (2 * H,), NZ),
        "w_ih": uniform(ks[2], (4 * H, IN_FEAT), H),       # torch LSTM weight_ih_l0
        "w_hh": uniform(ks[3], (4 * H, H), H),             # torch LSTM weight_hh_l0
        "b_ih": uniform(ks[4], (4 * H,), H),
        "b_hh": uniform(ks[5], (4 * H,), H),
        "fc_p_w": uniform(ks[6], (N_PARAMS, H), H),
        "fc_p_b": uniform(ks[7], (N_PARAMS,), H),
    }


def pack_decoder_params(p):
    """One-time, host-side packing: transpose, permute and concatenate all
    weights/biases into a single (112, 128) f32 blob (single input DMA)."""
    H = DEC_HIDDEN
    # Column permutation grouping fc_params outputs as
    # [pi_0..pi_{M-1}, mu_x_*, mu_y_*, sigma_x_*, sigma_y_*, rho_*, pen_0..2].
    perm = np.array([6 * k + j for j in range(6) for k in range(M)]
                    + [6 * M, 6 * M + 1, 6 * M + 2], dtype=np.int64)

    blob = np.zeros((WROWS, LANES), np.float32)
    blob[R_HC:R_HC + NZ, 0:2 * H] = np.asarray(p["fc_hc_w"]).T
    blob[R_IH:R_IH + IN_FEAT, 0:4 * H] = np.asarray(p["w_ih"]).T
    blob[R_HH:R_HH + H, 0:4 * H] = np.asarray(p["w_hh"]).T
    blob[R_WP:R_WP + H, 0:N_PARAMS] = np.asarray(p["fc_p_w"]).T[:, perm]
    blob[R_BHC, 0:2 * H] = np.asarray(p["fc_hc_b"])
    blob[R_BL, 0:4 * H] = np.asarray(p["b_ih"]) + np.asarray(p["b_hh"])
    blob[R_BP, 0:N_PARAMS] = np.asarray(p["fc_p_b"])[perm]
    return jnp.asarray(blob)


@jax.jit
def decoder_forward(inputs, z, w_blob):
    Tn, Bn, Fn = inputs.shape
    assert (Tn, Bn, Fn) == (T, B, IN_FEAT)
    assert (Tn * Bn) % (Bn + 1) == 0  # required by the len_out reshape (T=8, B=7)

    # No wrapper-side padding: raw arrays go straight in (padded in-kernel).
    out = pl.pallas_call(
        _decoder_kernel,
        grid=(1,),
        in_specs=[
            pl.BlockSpec((T, B, IN_FEAT), lambda i: (0, 0, 0)),   # full array
            pl.BlockSpec((B, NZ), lambda i: (0, 0)),              # full array
            pl.BlockSpec((WROWS, LANES), lambda i: (0, 0)),
        ],
        out_specs=pl.BlockSpec((TB, LANES), lambda i: (0, 0)),
        out_shape=jax.ShapeDtypeStruct((TB, LANES), jnp.float32),
        scratch_shapes=[
            pltpu.VMEM((TB, IN_PAD), jnp.float32),        # padded inputs
            pltpu.VMEM((B_PAD, NZ), jnp.float32),         # padded z
            pltpu.VMEM((TB, DEC_HIDDEN), jnp.float32),    # per-step hidden states
        ],
        compiler_params=pltpu.CompilerParams(dimension_semantics=("arbitrary",)),
    )(inputs, z, w_blob)

    # Strip padded batch rows and padded lanes BEFORE the len_out reshape.
    y = out.reshape(Tn, B_PAD, LANES)[:, :Bn, :N_PARAMS].reshape(Tn * Bn, N_PARAMS)
    len_out = Bn + 1                      # inputs.size(1) + 1 (training branch)
    grp = lambda j, w: y[:, j * M:j * M + w].reshape(len_out, -1, w)
    pi, mu_x, mu_y, sigma_x, sigma_y, rho_xy = (grp(j, M) for j in range(6))
    q = y[:, 6 * M:6 * M + 3].reshape(len_out, -1, 3)
    return pi, mu_x, mu_y, sigma_x, sigma_y, rho_xy, q


def reference_forward(inputs, z, p):
    """Plain-JAX replica of the PyTorch forward (training branch)."""
    H = DEC_HIDDEN
    hc = jnp.tanh(z @ p["fc_hc_w"].T + p["fc_hc_b"])
    h, c = hc[:, :H], hc[:, H:]
    outs = []
    for t in range(inputs.shape[0]):
        gates = inputs[t] @ p["w_ih"].T + p["b_ih"] + h @ p["w_hh"].T + p["b_hh"]
        i = jax.nn.sigmoid(gates[:, :H])
        f = jax.nn.sigmoid(gates[:, H:2 * H])
        g = jnp.tanh(gates[:, 2 * H:3 * H])
        o = jax.nn.sigmoid(gates[:, 3 * H:])
        c = f * c + i * g
        h = o * jnp.tanh(c)
        outs.append(h)
    outputs = jnp.stack(outs)                                   # (T, B, H)
    y = outputs.reshape(-1, H) @ p["fc_p_w"].T + p["fc_p_b"]    # (T*B, 6M+3)
    len_out = inputs.shape[1] + 1
    mix = y[:, :6 * M].reshape(-1, M, 6)
    pi = jax.nn.softmax(mix[:, :, 0], axis=-1).reshape(len_out, -1, M)
    mu_x = mix[:, :, 1].reshape(len_out, -1, M)
    mu_y = mix[:, :, 2].reshape(len_out, -1, M)
    sigma_x = jnp.exp(mix[:, :, 3]).reshape(len_out, -1, M)
    sigma_y = jnp.exp(mix[:, :, 4]).reshape(len_out, -1, M)
    rho_xy = jnp.tanh(mix[:, :, 5]).reshape(len_out, -1, M)
    q = jax.nn.softmax(y[:, 6 * M:], axis=-1).reshape(len_out, -1, 3)
    return pi, mu_x, mu_y, sigma_x, sigma_y, rho_xy, q


# TODO(synk): only the training branch + hidden_cell=None path is implemented
# (matching the reference); the eval branch (fc_params on the final hidden
# state only) is a trivially smaller variant and is not emitted here.
# TODO(synk): for production batch sizes on v7x, add a leading batch grid axis
# (padded to a multiple of 16) marked "parallel" so both TensorCores are used.

if __name__ == "__main__":
    key = jax.random.PRNGKey(0)
    k_in, k_z, k_p = jax.random.split(key, 3)
    inputs = jax.random.normal(k_in, (T, B, IN_FEAT), jnp.float32)
    z = jax.random.normal(k_z, (B, NZ), jnp.float32)
    params = init_params(k_p)
    w_blob = pack_decoder_params(params)      # one-time packing, outside jit

    outs = jax.block_until_ready(decoder_forward(inputs, z, w_blob))
    refs = jax.block_until_ready(reference_forward(inputs, z, params))

    names = ("pi", "mu_x", "mu_y", "sigma_x", "sigma_y", "rho_xy", "q")
    loose = {"pi", "q"}    # in-kernel softmax uses approx reciprocal (EUP)
    for name, a, b in zip(names, outs, refs):
        tol = 2e-3 if name in loose else 3e-4
        assert a.shape == b.shape, (name, a.shape, b.shape)
        assert bool(jnp.allclose(a, b, atol=tol, rtol=tol)), name
    print("KERNEL_OK")
</pallas_src>

<mosaic_0001>
module attributes {stable_mosaic.version = 11 : i64} {
  func.func @_decoder_kernel(%arg0: i32, %arg1: memref<8x7x21xf32, #tpu.memory_space<vmem>>, %arg2: memref<7x16xf32, #tpu.memory_space<vmem>>, %arg3: memref<112x128xf32, #tpu.memory_space<vmem>>, %arg4: memref<64x128xf32, #tpu.memory_space<vmem>>, %arg5: memref<64x24xf32, #tpu.memory_space<vmem>>, %arg6: memref<8x16xf32, #tpu.memory_space<vmem>>, %arg7: memref<64x32xf32, #tpu.memory_space<vmem>>) attributes {dimension_semantics = [#tpu.dimension_semantics<arbitrary>], iteration_bounds = array<i64: 1>, scalar_prefetch = 0 : i64, scratch_operands = 3 : i64, tpu.core_type = #tpu.core_type<tc>, window_params = [{pipeline_mode = #tpu.pipeline_mode<synchronous>, transform_indices = @transform_0, window_bounds = array<i64: 8, 7, 21>}, {pipeline_mode = #tpu.pipeline_mode<synchronous>, transform_indices = @transform_1, window_bounds = array<i64: 7, 16>}, {pipeline_mode = #tpu.pipeline_mode<synchronous>, transform_indices = @transform_2, window_bounds = array<i64: 112, 128>}, {pipeline_mode = #tpu.pipeline_mode<synchronous>, transform_indices = @transform_3, window_bounds = array<i64: 64, 128>}]} {
    %cst = arith.constant 0.000000e+00 : f32
    %0 = vector.broadcast %cst : f32 to vector<64x24xf32>
    %c0 = arith.constant 0 : index
    %c0_0 = arith.constant 0 : index
    %1 = vector.load %arg5[%c0, %c0_0] : memref<64x24xf32, #tpu.memory_space<vmem>>, vector<64x24xf32>
    tpu.vector_store %arg5[%c0, %c0_0], %0 {strides = array<i32>} : memref<64x24xf32, #tpu.memory_space<vmem>>, vector<64x24xf32>,
    %cst_1 = arith.constant 0.000000e+00 : f32
    %2 = vector.broadcast %cst_1 : f32 to vector<8x16xf32>
    %c0_2 = arith.constant 0 : index
    %c0_3 = arith.constant 0 : index
    %3 = vector.load %arg6[%c0_2, %c0_3] : memref<8x16xf32, #tpu.memory_space<vmem>>, vector<8x16xf32>
    tpu.vector_store %arg6[%c0_2, %c0_3], %2 {strides = array<i32>} : memref<8x16xf32, #tpu.memory_space<vmem>>, vector<8x16xf32>,
    %c0_4 = arith.constant 0 : index
    %c0_5 = arith.constant 0 : index
    %4 = vector.load %arg2[%c0_4, %c0_5] : memref<7x16xf32, #tpu.memory_space<vmem>>, vector<7x16xf32>
    %c0_6 = arith.constant 0 : index
    %c0_7 = arith.constant 0 : index
    %5 = vector.load %arg6[%c0_6, %c0_7] : memref<8x16xf32, #tpu.memory_space<vmem>>, vector<7x16xf32>
    tpu.vector_store %arg6[%c0_6, %c0_7], %4 {strides = array<i32>} : memref<8x16xf32, #tpu.memory_space<vmem>>, vector<7x16xf32>,
    %c0_8 = arith.constant 0 : index
    %c0_9 = arith.constant 0 : index
    %c0_10 = arith.constant 0 : index
    %6 = vector.load %arg1[%c0_8, %c0_9, %c0_10] : memref<8x7x21xf32, #tpu.memory_space<vmem>>, vector<1x7x21xf32>
    %7 = vector.shape_cast %6 : vector<1x7x21xf32> to vector<7x21xf32>
    %c0_11 = arith.constant 0 : index
    %c0_12 = arith.constant 0 : index
    %8 = vector.load %arg5[%c0_11, %c0_12] : memref<64x24xf32, #tpu.memory_space<vmem>>, vector<7x21xf32>
    tpu.vector_store %arg5[%c0_11, %c0_12], %7 {strides = array<i32>} : memref<64x24xf32, #tpu.memory_space<vmem>>, vector<7x21xf32>,
    %c1 = arith.constant 1 : index
    %c0_13 = arith.constant 0 : index
    %c0_14 = arith.constant 0 : index
    %9 = vector.load %arg1[%c1, %c0_13, %c0_14] : memref<8x7x21xf32, #tpu.memory_space<vmem>>, vector<1x7x21xf32>
    %10 = vector.shape_cast %9 : vector<1x7x21xf32> to vector<7x21xf32>
    %c8 = arith.constant 8 : index
    %c0_15 = arith.constant 0 : index
    %11 = vector.load %arg5[%c8, %c0_15] : memref<64x24xf32, #tpu.memory_space<vmem>>, vector<7x21xf32>
    tpu.vector_store %arg5[%c8, %c0_15], %10 {strides = array<i32>} : memref<64x24xf32, #tpu.memory_space<vmem>>, vector<7x21xf32>,
    %c2 = arith.constant 2 : index
    %c0_16 = arith.constant 0 : index
    %c0_17 = arith.constant 0 : index
    %12 = vector.load %arg1[%c2, %c0_16, %c0_17] : memref<8x7x21xf32, #tpu.memory_space<vmem>>, vector<1x7x21xf32>
    %13 = vector.shape_cast %12 : vector<1x7x21xf32> to vector<7x21xf32>
    %c16 = arith.constant 16 : index
    %c0_18 = arith.constant 0 : index
    %14 = vector.load %arg5[%c16, %c0_18] : memref<64x24xf32, #tpu.memory_space<vmem>>, vector<7x21xf32>
    tpu.vector_store %arg5[%c16, %c0_18], %13 {strides = array<i32>} : memref<64x24xf32, #tpu.memory_space<vmem>>, vector<7x21xf32>,
    %c3 = arith.constant 3 : index
    %c0_19 = arith.constant 0 : index
    %c0_20 = arith.constant 0 : index
    %15 = vector.load %arg1[%c3, %c0_19, %c0_20] : memref<8x7x21xf32, #tpu.memory_space<vmem>>, vector<1x7x21xf32>
    %16 = vector.shape_cast %15 : vector<1x7x21xf32> to vector<7x21xf32>
    %c24 = arith.constant 24 : index
    %c0_21 = arith.constant 0 : index
    %17 = vector.load %arg5[%c24, %c0_21] : memref<64x24xf32, #tpu.memory_space<vmem>>, vector<7x21xf32>
    tpu.vector_store %arg5[%c24, %c0_21], %16 {strides = array<i32>} : memref<64x24xf32, #tpu.memory_space<vmem>>, vector<7x21xf32>,
    %c4 = arith.constant 4 : index
    %c0_22 = arith.constant 0 : index
    %c0_23 = arith.constant 0 : index
    %18 = vector.load %arg1[%c4, %c0_22, %c0_23] : memref<8x7x21xf32, #tpu.memory_space<vmem>>, vector<1x7x21xf32>
    %19 = vector.shape_cast %18 : vector<1x7x21xf32> to vector<7x21xf32>
    %c32 = arith.constant 32 : index
    %c0_24 = arith.constant 0 : index
    %20 = vector.load %arg5[%c32, %c0_24] : memref<64x24xf32, #tpu.memory_space<vmem>>, vector<7x21xf32>
    tpu.vector_store %arg5[%c32, %c0_24], %19 {strides = array<i32>} : memref<64x24xf32, #tpu.memory_space<vmem>>, vector<7x21xf32>,
    %c5 = arith.constant 5 : index
    %c0_25 = arith.constant 0 : index
    %c0_26 = arith.constant 0 : index
    %21 = vector.load %arg1[%c5, %c0_25, %c0_26] : memref<8x7x21xf32, #tpu.memory_space<vmem>>, vector<1x7x21xf32>
    %22 = vector.shape_cast %21 : vector<1x7x21xf32> to vector<7x21xf32>
    %c40 = arith.constant 40 : index
    %c0_27 = arith.constant 0 : index
    %23 = vector.load %arg5[%c40, %c0_27] : memref<64x24xf32, #tpu.memory_space<vmem>>, vector<7x21xf32>
    tpu.vector_store %arg5[%c40, %c0_27], %22 {strides = array<i32>} : memref<64x24xf32, #tpu.memory_space<vmem>>, vector<7x21xf32>,
    %c6 = arith.constant 6 : index
    %c0_28 = arith.constant 0 : index
    %c0_29 = arith.constant 0 : index
    %24 = vector.load %arg1[%c6, %c0_28, %c0_29] : memref<8x7x21xf32, #tpu.memory_space<vmem>>, vector<1x7x21xf32>
    %25 = vector.shape_cast %24 : vector<1x7x21xf32> to vector<7x21xf32>
    %c48 = arith.constant 48 : index
    %c0_30 = arith.constant 0 : index
    %26 = vector.load %arg5[%c48, %c0_30] : memref<64x24xf32, #tpu.memory_space<vmem>>, vector<7x21xf32>
    tpu.vector_store %arg5[%c48, %c0_30], %25 {strides = array<i32>} : memref<64x24xf32, #tpu.memory_space<vmem>>, vector<7x21xf32>,
    %c7 = arith.constant 7 : index
    %c0_31 = arith.constant 0 : index
    %c0_32 = arith.constant 0 : index
    %27 = vector.load %arg1[%c7, %c0_31, %c0_32] : memref<8x7x21xf32, #tpu.memory_space<vmem>>, vector<1x7x21xf32>
    %28 = vector.shape_cast %27 : vector<1x7x21xf32> to vector<7x21xf32>
    %c56 = arith.constant 56 : index
    %c0_33 = arith.constant 0 : index
    %29 = vector.load %arg5[%c56, %c0_33] : memref<64x24xf32, #tpu.memory_space<vmem>>, vector<7x21xf32>
    tpu.vector_store %arg5[%c56, %c0_33], %28 {strides = array<i32>} : memref<64x24xf32, #tpu.memory_space<vmem>>, vector<7x21xf32>,
    %c0_34 = arith.constant 0 : index
    %c0_35 = arith.constant 0 : index
    %30 = vector.load %arg3[%c0_34, %c0_35] : memref<112x128xf32, #tpu.memory_space<vmem>>, vector<16x128xf32>
    %c16_36 = arith.constant 16 : index
    %c0_37 = arith.constant 0 : index
    %31 = vector.load %arg3[%c16_36, %c0_37] : memref<112x128xf32, #tpu.memory_space<vmem>>, vector<24x128xf32>
    %c40_38 = arith.constant 40 : index
    %c0_39 = arith.constant 0 : index
    %32 = vector.load %arg3[%c40_38, %c0_39] : memref<112x128xf32, #tpu.memory_space<vmem>>, vector<32x128xf32>
    %c104 = arith.constant 104 : index
    %c0_40 = arith.constant 0 : index
    %33 = vector.load %arg3[%c104, %c0_40] : memref<112x128xf32, #tpu.memory_space<vmem>>, vector<1x128xf32>
    %c105 = arith.constant 105 : index
    %c0_41 = arith.constant 0 : index
    %34 = vector.load %arg3[%c105, %c0_41] : memref<112x128xf32, #tpu.memory_space<vmem>>, vector<1x128xf32>
    %c0_42 = arith.constant 0 : index
    %c0_43 = arith.constant 0 : index
    %35 = vector.load %arg6[%c0_42, %c0_43] : memref<8x16xf32, #tpu.memory_space<vmem>>, vector<8x16xf32>
    %cst_44 = arith.constant dense<0.000000e+00> : vector<8x128xf32>
    %36 = tpu.matmul %35, %30, %cst_44 {dimension_numbers = #tpu.dot_dimension_numbers<[1], [0], [0], [1], [0, 0, 1, 1], [], []>} : vector<8x16xf32>, vector<16x128xf32>, vector<8x128xf32> -> vector<8x128xf32>
    %37 = vector.broadcast %33 : vector<1x128xf32> to vector<8x128xf32>
    %38 = arith.addf %36, %37 : vector<8x128xf32>
    %39 = math.tanh %38 : vector<8x128xf32>
    %40 = vector.extract_strided_slice %39 {offsets = [0, 0], sizes = [8, 32], strides = [1, 1]} : vector<8x128xf32> to vector<8x32xf32>
    %41 = vector.extract_strided_slice %39 {offsets = [0, 32], sizes = [8, 32], strides = [1, 1]} : vector<8x128xf32> to vector<8x32xf32>
    %c0_45 = arith.constant 0 : index
    %c0_46 = arith.constant 0 : index
    %42 = vector.load %arg5[%c0_45, %c0_46] : memref<64x24xf32, #tpu.memory_space<vmem>>, vector<64x24xf32>
    %cst_47 = arith.constant dense<0.000000e+00> : vector<64x128xf32>
    %43 = tpu.matmul %42, %31, %cst_47 {dimension_numbers = #tpu.dot_dimension_numbers<[1], [0], [0], [1], [0, 0, 1, 1], [], []>} : vector<64x24xf32>, vector<24x128xf32>, vector<64x128xf32> -> vector<64x128xf32>
    %44 = vector.broadcast %34 : vector<1x128xf32> to vector<64x128xf32>
    %45 = arith.addf %43, %44 : vector<64x128xf32>
    %46 = tpu.iota {dimensions = array<i32: 1>} : vector<8x128xi32>
    %c64_i32 = arith.constant 64 : i32
    %47 = vector.broadcast %c64_i32 : i32 to vector<8x128xi32>
    %48 = arith.cmpi sge, %46, %47 : vector<8x128xi32>
    %c96_i32 = arith.constant 96 : i32
    %49 = vector.broadcast %c96_i32 : i32 to vector<8x128xi32>
    %50 = arith.cmpi slt, %46, %49 : vector<8x128xi32>
    %51 = arith.andi %48, %50 : vector<8x128xi1>
    %cst_48 = arith.constant 1.000000e+00 : f32
    %cst_49 = arith.constant 5.000000e-01 : f32
    %52 = vector.broadcast %cst_48 : f32 to vector<8x128xf32>
    %53 = vector.broadcast %cst_49 : f32 to vector<8x128xf32>
    %54 = arith.select %51, %52, %53 : vector<8x128xi1>, vector<8x128xf32>
    %55 = vector.extract_strided_slice %45 {offsets = [0, 0], sizes = [8, 128], strides = [1, 1]} : vector<64x128xf32> to vector<8x128xf32>
    %cst_50 = arith.constant dense<0.000000e+00> : vector<8x128xf32>
    %56 = tpu.matmul %40, %32, %cst_50 {dimension_numbers = #tpu.dot_dimension_numbers<[1], [0], [0], [1], [0, 0, 1, 1], [], []>} : vector<8x32xf32>, vector<32x128xf32>, vector<8x128xf32> -> vector<8x128xf32>
    %57 = arith.addf %55, %56 : vector<8x128xf32>
    %58 = arith.mulf %57, %54 : vector<8x128xf32>
    %59 = math.tanh %58 : vector<8x128xf32>
    %cst_51 = arith.constant 5.000000e-01 : f32
    %60 = vector.broadcast %cst_51 : f32 to vector<8x128xf32>
    %61 = arith.mulf %60, %59 : vector<8x128xf32>
    %cst_52 = arith.constant 5.000000e-01 : f32
    %62 = vector.broadcast %cst_52 : f32 to vector<8x128xf32>
    %63 = arith.addf %61, %62 : vector<8x128xf32>
    %64 = arith.select %51, %59, %63 : vector<8x128xi1>, vector<8x128xf32>
    %65 = vector.extract_strided_slice %64 {offsets = [0, 0], sizes = [8, 32], strides = [1, 1]} : vector<8x128xf32> to vector<8x32xf32>
    %66 = vector.extract_strided_slice %64 {offsets = [0, 32], sizes = [8, 32], strides = [1, 1]} : vector<8x128xf32> to vector<8x32xf32>
    %67 = vector.extract_strided_slice %64 {offsets = [0, 64], sizes = [8, 32], strides = [1, 1]} : vector<8x128xf32> to vector<8x32xf32>
    %68 = vector.extract_strided_slice %64 {offsets = [0, 96], sizes = [8, 32], strides = [1, 1]} : vector<8x128xf32> to vector<8x32xf32>
    %69 = arith.mulf %66, %41 : vector<8x32xf32>
    %70 = arith.mulf %65, %67 : vector<8x32xf32>
    %71 = arith.addf %69, %70 : vector<8x32xf32>
    %72 = math.tanh %71 : vector<8x32xf32>
    %73 = arith.mulf %68, %72 : vector<8x32xf32>
    %c0_53 = arith.constant 0 : index
    %c0_54 = arith.constant 0 : index
    %74 = vector.load %arg7[%c0_53, %c0_54] : memref<64x32xf32, #tpu.memory_space<vmem>>, vector<8x32xf32>
    tpu.vector_store %arg7[%c0_53, %c0_54], %73 {strides = array<i32>} : memref<64x32xf32, #tpu.memory_space<vmem>>, vector<8x32xf32>,
    %75 = vector.extract_strided_slice %45 {offsets = [8, 0], sizes = [8, 128], strides = [1, 1]} : vector<64x128xf32> to vector<8x128xf32>
    %cst_55 = arith.constant dense<0.000000e+00> : vector<8x128xf32>
    %76 = tpu.matmul %73, %32, %cst_55 {dimension_numbers = #tpu.dot_dimension_numbers<[1], [0], [0], [1], [0, 0, 1, 1], [], []>} : vector<8x32xf32>, vector<32x128xf32>, vector<8x128xf32> -> vector<8x128xf32>
    %77 = arith.addf %75, %76 : vector<8x128xf32>
    %78 = arith.mulf %77, %54 : vector<8x128xf32>
    %79 = math.tanh %78 : vector<8x128xf32>
    %cst_56 = arith.constant 5.000000e-01 : f32
    %80 = vector.broadcast %cst_56 : f32 to vector<8x128xf32>
    %81 = arith.mulf %80, %79 : vector<8x128xf32>
    %cst_57 = arith.constant 5.000000e-01 : f32
    %82 = vector.broadcast %cst_57 : f32 to vector<8x128xf32>
    %83 = arith.addf %81, %82 : vector<8x128xf32>
    %84 = arith.select %51, %79, %83 : vector<8x128xi1>, vector<8x128xf32>
    %85 = vector.extract_strided_slice %84 {offsets = [0, 0], sizes = [8, 32], strides = [1, 1]} : vector<8x128xf32> to vector<8x32xf32>
    %86 = vector.extract_strided_slice %84 {offsets = [0, 32], sizes = [8, 32], strides = [1, 1]} : vector<8x128xf32> to vector<8x32xf32>
    %87 = vector.extract_strided_slice %84 {offsets = [0, 64], sizes = [8, 32], strides = [1, 1]} : vector<8x128xf32> to vector<8x32xf32>
    %88 = vector.extract_strided_slice %84 {offsets = [0, 96], sizes = [8, 32], strides = [1, 1]} : vector<8x128xf32> to vector<8x32xf32>
    %89 = arith.mulf %86, %71 : vector<8x32xf32>
    %90 = arith.mulf %85, %87 : vector<8x32xf32>
    %91 = arith.addf %89, %90 : vector<8x32xf32>
    %92 = math.tanh %91 : vector<8x32xf32>
    %93 = arith.mulf %88, %92 : vector<8x32xf32>
    %c8_58 = arith.constant 8 : index
    %c0_59 = arith.constant 0 : index
    %94 = vector.load %arg7[%c8_58, %c0_59] : memref<64x32xf32, #tpu.memory_space<vmem>>, vector<8x32xf32>
    tpu.vector_store %arg7[%c8_58, %c0_59], %93 {strides = array<i32>} : memref<64x32xf32, #tpu.memory_space<vmem>>, vector<8x32xf32>,
    %95 = vector.extract_strided_slice %45 {offsets = [16, 0], sizes = [8, 128], strides = [1, 1]} : vector<64x128xf32> to vector<8x128xf32>
    %cst_60 = arith.constant dense<0.000000e+00> : vector<8x128xf32>
    %96 = tpu.matmul %93, %32, %cst_60 {dimension_numbers = #tpu.dot_dimension_numbers<[1], [0], [0], [1], [0, 0, 1, 1], [], []>} : vector<8x32xf32>, vector<32x128xf32>, vector<8x128xf32> -> vector<8x128xf32>
    %97 = arith.addf %95, %96 : vector<8x128xf32>
    %98 = arith.mulf %97, %54 : vector<8x128xf32>
    %99 = math.tanh %98 : vector<8x128xf32>
    %cst_61 = arith.constant 5.000000e-01 : f32
    %100 = vector.broadcast %cst_61 : f32 to vector<8x128xf32>
    %101 = arith.mulf %100, %99 : vector<8x128xf32>
    %cst_62 = arith.constant 5.000000e-01 : f32
    %102 = vector.broadcast %cst_62 : f32 to vector<8x128xf32>
    %103 = arith.addf %101, %102 : vector<8x128xf32>
    %104 = arith.select %51, %99, %103 : vector<8x128xi1>, vector<8x128xf32>
    %105 = vector.extract_strided_slice %104 {offsets = [0, 0], sizes = [8, 32], strides = [1, 1]} : vector<8x128xf32> to vector<8x32xf32>
    %106 = vector.extract_strided_slice %104 {offsets = [0, 32], sizes = [8, 32], strides = [1, 1]} : vector<8x128xf32> to vector<8x32xf32>
    %107 = vector.extract_strided_slice %104 {offsets = [0, 64], sizes = [8, 32], strides = [1, 1]} : vector<8x128xf32> to vector<8x32xf32>
    %108 = vector.extract_strided_slice %104 {offsets = [0, 96], sizes = [8, 32], strides = [1, 1]} : vector<8x128xf32> to vector<8x32xf32>
    %109 = arith.mulf %106, %91 : vector<8x32xf32>
    %110 = arith.mulf %105, %107 : vector<8x32xf32>
    %111 = arith.addf %109, %110 : vector<8x32xf32>
    %112 = math.tanh %111 : vector<8x32xf32>
    %113 = arith.mulf %108, %112 : vector<8x32xf32>
    %c16_63 = arith.constant 16 : index
    %c0_64 = arith.constant 0 : index
    %114 = vector.load %arg7[%c16_63, %c0_64] : memref<64x32xf32, #tpu.memory_space<vmem>>, vector<8x32xf32>
    tpu.vector_store %arg7[%c16_63, %c0_64], %113 {strides = array<i32>} : memref<64x32xf32, #tpu.memory_space<vmem>>, vector<8x32xf32>,
    %115 = vector.extract_strided_slice %45 {offsets = [24, 0], sizes = [8, 128], strides = [1, 1]} : vector<64x128xf32> to vector<8x128xf32>
    %cst_65 = arith.constant dense<0.000000e+00> : vector<8x128xf32>
    %116 = tpu.matmul %113, %32, %cst_65 {dimension_numbers = #tpu.dot_dimension_numbers<[1], [0], [0], [1], [0, 0, 1, 1], [], []>} : vector<8x32xf32>, vector<32x128xf32>, vector<8x128xf32> -> vector<8x128xf32>
    %117 = arith.addf %115, %116 : vector<8x128xf32>
    %118 = arith.mulf %117, %54 : vector<8x128xf32>
    %119 = math.tanh %118 : vector<8x128xf32>
    %cst_66 = arith.constant 5.000000e-01 : f32
    %120 = vector.broadcast %cst_66 : f32 to vector<8x128xf32>
    %121 = arith.mulf %120, %119 : vector<8x128xf32>
    %cst_67 = arith.constant 5.000000e-01 : f32
    %122 = vector.broadcast %cst_67 : f32 to vector<8x128xf32>
    %123 = arith.addf %121, %122 : vector<8x128xf32>
    %124 = arith.select %51, %119, %123 : vector<8x128xi1>, vector<8x128xf32>
    %125 = vector.extract_strided_slice %124 {offsets = [0, 0], sizes = [8, 32], strides = [1, 1]} : vector<8x128xf32> to vector<8x32xf32>
    %126 = vector.extract_strided_slice %124 {offsets = [0, 32], sizes = [8, 32], strides = [1, 1]} : vector<8x128xf32> to vector<8x32xf32>
    %127 = vector.extract_strided_slice %124 {offsets = [0, 64], sizes = [8, 32], strides = [1, 1]} : vector<8x128xf32> to vector<8x32xf32>
    %128 = vector.extract_strided_slice %124 {offsets = [0, 96], sizes = [8, 32], strides = [1, 1]} : vector<8x128xf32> to vector<8x32xf32>
    %129 = arith.mulf %126, %111 : vector<8x32xf32>
    %130 = arith.mulf %125, %127 : vector<8x32xf32>
    %131 = arith.addf %129, %130 : vector<8x32xf32>
    %132 = math.tanh %131 : vector<8x32xf32>
    %133 = arith.mulf %128, %132 : vector<8x32xf32>
    %c24_68 = arith.constant 24 : index
    %c0_69 = arith.constant 0 : index
    %134 = vector.load %arg7[%c24_68, %c0_69] : memref<64x32xf32, #tpu.memory_space<vmem>>, vector<8x32xf32>
    tpu.vector_store %arg7[%c24_68, %c0_69], %133 {strides = array<i32>} : memref<64x32xf32, #tpu.memory_space<vmem>>, vector<8x32xf32>,
    %135 = vector.extract_strided_slice %45 {offsets = [32, 0], sizes = [8, 128], strides = [1, 1]} : vector<64x128xf32> to vector<8x128xf32>
    %cst_70 = arith.constant dense<0.000000e+00> : vector<8x128xf32>
    %136 = tpu.matmul %133, %32, %cst_70 {dimension_numbers = #tpu.dot_dimension_numbers<[1], [0], [0], [1], [0, 0, 1, 1], [], []>} : vector<8x32xf32>, vector<32x128xf32>, vector<8x128xf32> -> vector<8x128xf32>
    %137 = arith.addf %135, %136 : vector<8x128xf32>
    %138 = arith.mulf %137, %54 : vector<8x128xf32>
    %139 = math.tanh %138 : vector<8x128xf32>
    %cst_71 = arith.constant 5.000000e-01 : f32
    %140 = vector.broadcast %cst_71 : f32 to vector<8x128xf32>
    %141 = arith.mulf %140, %139 : vector<8x128xf32>
    %cst_72 = arith.constant 5.000000e-01 : f32
    %142 = vector.broadcast %cst_72 : f32 to vector<8x128xf32>
    %143 = arith.addf %141, %142 : vector<8x128xf32>
    %144 = arith.select %51, %139, %143 : vector<8x128xi1>, vector<8x128xf32>
    %145 = vector.extract_strided_slice %144 {offsets = [0, 0], sizes = [8, 32], strides = [1, 1]} : vector<8x128xf32> to vector<8x32xf32>
    %146 = vector.extract_strided_slice %144 {offsets = [0, 32], sizes = [8, 32], strides = [1, 1]} : vector<8x128xf32> to vector<8x32xf32>
    %147 = vector.extract_strided_slice %144 {offsets = [0, 64], sizes = [8, 32], strides = [1, 1]} : vector<8x128xf32> to vector<8x32xf32>
    %148 = vector.extract_strided_slice %144 {offsets = [0, 96], sizes = [8, 32], strides = [1, 1]} : vector<8x128xf32> to vector<8x32xf32>
    %149 = arith.mulf %146, %131 : vector<8x32xf32>
    %150 = arith.mulf %145, %147 : vector<8x32xf32>
    %151 = arith.addf %149, %150 : vector<8x32xf32>
    %152 = math.tanh %151 : vector<8x32xf32>
    %153 = arith.mulf %148, %152 : vector<8x32xf32>
    %c32_73 = arith.constant 32 : index
    %c0_74 = arith.constant 0 : index
    %154 = vector.load %arg7[%c32_73, %c0_74] : memref<64x32xf32, #tpu.memory_space<vmem>>, vector<8x32xf32>
    tpu.vector_store %arg7[%c32_73, %c0_74], %153 {strides = array<i32>} : memref<64x32xf32, #tpu.memory_space<vmem>>, vector<8x32xf32>,
    %155 = vector.extract_strided_slice %45 {offsets = [40, 0], sizes = [8, 128], strides = [1, 1]} : vector<64x128xf32> to vector<8x128xf32>
    %cst_75 = arith.constant dense<0.000000e+00> : vector<8x128xf32>
    %156 = tpu.matmul %153, %32, %cst_75 {dimension_numbers = #tpu.dot_dimension_numbers<[1], [0], [0], [1], [0, 0, 1, 1], [], []>} : vector<8x32xf32>, vector<32x128xf32>, vector<8x128xf32> -> vector<8x128xf32>
    %157 = arith.addf %155, %156 : vector<8x128xf32>
    %158 = arith.mulf %157, %54 : vector<8x128xf32>
    %159 = math.tanh %158 : vector<8x128xf32>
    %cst_76 = arith.constant 5.000000e-01 : f32
    %160 = vector.broadcast %cst_76 : f32 to vector<8x128xf32>
    %161 = arith.mulf %160, %159 : vector<8x128xf32>
    %cst_77 = arith.constant 5.000000e-01 : f32
    %162 = vector.broadcast %cst_77 : f32 to vector<8x128xf32>
    %163 = arith.addf %161, %162 : vector<8x128xf32>
    %164 = arith.select %51, %159, %163 : vector<8x128xi1>, vector<8x128xf32>
    %165 = vector.extract_strided_slice %164 {offsets = [0, 0], sizes = [8, 32], strides = [1, 1]} : vector<8x128xf32> to vector<8x32xf32>
    %166 = vector.extract_strided_slice %164 {offsets = [0, 32], sizes = [8, 32], strides = [1, 1]} : vector<8x128xf32> to vector<8x32xf32>
    %167 = vector.extract_strided_slice %164 {offsets = [0, 64], sizes = [8, 32], strides = [1, 1]} : vector<8x128xf32> to vector<8x32xf32>
    %168 = vector.extract_strided_slice %164 {offsets = [0, 96], sizes = [8, 32], strides = [1, 1]} : vector<8x128xf32> to vector<8x32xf32>
    %169 = arith.mulf %166, %151 : vector<8x32xf32>
    %170 = arith.mulf %165, %167 : vector<8x32xf32>
    %171 = arith.addf %169, %170 : vector<8x32xf32>
    %172 = math.tanh %171 : vector<8x32xf32>
    %173 = arith.mulf %168, %172 : vector<8x32xf32>
    %c40_78 = arith.constant 40 : index
    %c0_79 = arith.constant 0 : index
    %174 = vector.load %arg7[%c40_78, %c0_79] : memref<64x32xf32, #tpu.memory_space<vmem>>, vector<8x32xf32>
    tpu.vector_store %arg7[%c40_78, %c0_79], %173 {strides = array<i32>} : memref<64x32xf32, #tpu.memory_space<vmem>>, vector<8x32xf32>,
    %175 = vector.extract_strided_slice %45 {offsets = [48, 0], sizes = [8, 128], strides = [1, 1]} : vector<64x128xf32> to vector<8x128xf32>
    %cst_80 = arith.constant dense<0.000000e+00> : vector<8x128xf32>
    %176 = tpu.matmul %173, %32, %cst_80 {dimension_numbers = #tpu.dot_dimension_numbers<[1], [0], [0], [1], [0, 0, 1, 1], [], []>} : vector<8x32xf32>, vector<32x128xf32>, vector<8x128xf32> -> vector<8x128xf32>
    %177 = arith.addf %175, %176 : vector<8x128xf32>
    %178 = arith.mulf %177, %54 : vector<8x128xf32>
    %179 = math.tanh %178 : vector<8x128xf32>
    %cst_81 = arith.constant 5.000000e-01 : f32
    %180 = vector.broadcast %cst_81 : f32 to vector<8x128xf32>
    %181 = arith.mulf %180, %179 : vector<8x128xf32>
    %cst_82 = arith.constant 5.000000e-01 : f32
    %182 = vector.broadcast %cst_82 : f32 to vector<8x128xf32>
    %183 = arith.addf %181, %182 : vector<8x128xf32>
    %184 = arith.select %51, %179, %183 : vector<8x128xi1>, vector<8x128xf32>
    %185 = vector.extract_strided_slice %184 {offsets = [0, 0], sizes = [8, 32], strides = [1, 1]} : vector<8x128xf32> to vector<8x32xf32>
    %186 = vector.extract_strided_slice %184 {offsets = [0, 32], sizes = [8, 32], strides = [1, 1]} : vector<8x128xf32> to vector<8x32xf32>
    %187 = vector.extract_strided_slice %184 {offsets = [0, 64], sizes = [8, 32], strides = [1, 1]} : vector<8x128xf32> to vector<8x32xf32>
    %188 = vector.extract_strided_slice %184 {offsets = [0, 96], sizes = [8, 32], strides = [1, 1]} : vector<8x128xf32> to vector<8x32xf32>
    %189 = arith.mulf %186, %171 : vector<8x32xf32>
    %190 = arith.mulf %185, %187 : vector<8x32xf32>
    %191 = arith.addf %189, %190 : vector<8x32xf32>
    %192 = math.tanh %191 : vector<8x32xf32>
    %193 = arith.mulf %188, %192 : vector<8x32xf32>
    %c48_83 = arith.constant 48 : index
    %c0_84 = arith.constant 0 : index
    %194 = vector.load %arg7[%c48_83, %c0_84] : memref<64x32xf32, #tpu.memory_space<vmem>>, vector<8x32xf32>
    tpu.vector_store %arg7[%c48_83, %c0_84], %193 {strides = array<i32>} : memref<64x32xf32, #tpu.memory_space<vmem>>, vector<8x32xf32>,
    %195 = vector.extract_strided_slice %45 {offsets = [56, 0], sizes = [8, 128], strides = [1, 1]} : vector<64x128xf32> to vector<8x128xf32>
    %cst_85 = arith.constant dense<0.000000e+00> : vector<8x128xf32>
    %196 = tpu.matmul %193, %32, %cst_85 {dimension_numbers = #tpu.dot_dimension_numbers<[1], [0], [0], [1], [0, 0, 1, 1], [], []>} : vector<8x32xf32>, vector<32x128xf32>, vector<8x128xf32> -> vector<8x128xf32>
    %197 = arith.addf %195, %196 : vector<8x128xf32>
    %198 = arith.mulf %197, %54 : vector<8x128xf32>
    %199 = math.tanh %198 : vector<8x128xf32>
    %cst_86 = arith.constant 5.000000e-01 : f32
    %200 = vector.broadcast %cst_86 : f32 to vector<8x128xf32>
    %201 = arith.mulf %200, %199 : vector<8x128xf32>
    %cst_87 = arith.constant 5.000000e-01 : f32
    %202 = vector.broadcast %cst_87 : f32 to vector<8x128xf32>
    %203 = arith.addf %201, %202 : vector<8x128xf32>
    %204 = arith.select %51, %199, %203 : vector<8x128xi1>, vector<8x128xf32>
    %205 = vector.extract_strided_slice %204 {offsets = [0, 0], sizes = [8, 32], strides = [1, 1]} : vector<8x128xf32> to vector<8x32xf32>
    %206 = vector.extract_strided_slice %204 {offsets = [0, 32], sizes = [8, 32], strides = [1, 1]} : vector<8x128xf32> to vector<8x32xf32>
    %207 = vector.extract_strided_slice %204 {offsets = [0, 64], sizes = [8, 32], strides = [1, 1]} : vector<8x128xf32> to vector<8x32xf32>
    %208 = vector.extract_strided_slice %204 {offsets = [0, 96], sizes = [8, 32], strides = [1, 1]} : vector<8x128xf32> to vector<8x32xf32>
    %209 = arith.mulf %206, %191 : vector<8x32xf32>
    %210 = arith.mulf %205, %207 : vector<8x32xf32>
    %211 = arith.addf %209, %210 : vector<8x32xf32>
    %212 = math.tanh %211 : vector<8x32xf32>
    %213 = arith.mulf %208, %212 : vector<8x32xf32>
    %c56_88 = arith.constant 56 : index
    %c0_89 = arith.constant 0 : index
    %214 = vector.load %arg7[%c56_88, %c0_89] : memref<64x32xf32, #tpu.memory_space<vmem>>, vector<8x32xf32>
    tpu.vector_store %arg7[%c56_88, %c0_89], %213 {strides = array<i32>} : memref<64x32xf32, #tpu.memory_space<vmem>>, vector<8x32xf32>,
    %c72 = arith.constant 72 : index
    %c0_90 = arith.constant 0 : index
    %215 = vector.load %arg3[%c72, %c0_90] : memref<112x128xf32, #tpu.memory_space<vmem>>, vector<32x128xf32>
    %c106 = arith.constant 106 : index
    %c0_91 = arith.constant 0 : index
    %216 = vector.load %arg3[%c106, %c0_91] : memref<112x128xf32, #tpu.memory_space<vmem>>, vector<1x128xf32>
    %c0_92 = arith.constant 0 : index
    %c0_93 = arith.constant 0 : index
    %217 = vector.load %arg7[%c0_92, %c0_93] : memref<64x32xf32, #tpu.memory_space<vmem>>, vector<64x32xf32>
    %cst_94 = arith.constant dense<0.000000e+00> : vector<64x128xf32>
    %218 = tpu.matmul %217, %215, %cst_94 {dimension_numbers = #tpu.dot_dimension_numbers<[1], [0], [0], [1], [0, 0, 1, 1], [], []>} : vector<64x32xf32>, vector<32x128xf32>, vector<64x128xf32> -> vector<64x128xf32>
    %219 = vector.broadcast %216 : vector<1x128xf32> to vector<64x128xf32>
    %220 = arith.addf %218, %219 : vector<64x128xf32>
    %221 = tpu.iota {dimensions = array<i32: 1>} : vector<64x128xi32>
    %c5_i32 = arith.constant 5 : i32
    %222 = vector.broadcast %c5_i32 : i32 to vector<64x128xi32>
    %223 = arith.cmpi slt, %221, %222 : vector<64x128xi32>
    %c15_i32 = arith.constant 15 : i32
    %224 = vector.broadcast %c15_i32 : i32 to vector<64x128xi32>
    %225 = arith.cmpi sge, %221, %224 : vector<64x128xi32>
    %c25_i32 = arith.constant 25 : i32
    %226 = vector.broadcast %c25_i32 : i32 to vector<64x128xi32>
    %227 = arith.cmpi slt, %221, %226 : vector<64x128xi32>
    %228 = arith.andi %225, %227 : vector<64x128xi1>
    %c25_i32_95 = arith.constant 25 : i32
    %229 = vector.broadcast %c25_i32_95 : i32 to vector<64x128xi32>
    %230 = arith.cmpi sge, %221, %229 : vector<64x128xi32>
    %c30_i32 = arith.constant 30 : i32
    %231 = vector.broadcast %c30_i32 : i32 to vector<64x128xi32>
    %232 = arith.cmpi slt, %221, %231 : vector<64x128xi32>
    %233 = arith.andi %230, %232 : vector<64x128xi1>
    %c30_i32_96 = arith.constant 30 : i32
    %234 = vector.broadcast %c30_i32_96 : i32 to vector<64x128xi32>
    %235 = arith.cmpi sge, %221, %234 : vector<64x128xi32>
    %c33_i32 = arith.constant 33 : i32
    %236 = vector.broadcast %c33_i32 : i32 to vector<64x128xi32>
    %237 = arith.cmpi slt, %221, %236 : vector<64x128xi32>
    %238 = arith.andi %235, %237 : vector<64x128xi1>
    %cst_97 = arith.constant 0xFF800000 : f32
    %239 = vector.broadcast %cst_97 : f32 to vector<64x128xf32>
    %240 = arith.select %223, %220, %239 : vector<64x128xi1>, vector<64x128xf32>
    %cst_98 = arith.constant dense<0xFF800000> : vector<64xf32>
    %241 = vector.multi_reduction <maximumf>, %240, %cst_98 [1] : vector<64x128xf32> to vector<64xf32>
    %242 = vector.shape_cast %241 : vector<64xf32> to vector<64x1xf32>
    %cst_99 = arith.constant 0xFF800000 : f32
    %243 = vector.broadcast %cst_99 : f32 to vector<64x128xf32>
    %244 = arith.select %238, %220, %243 : vector<64x128xi1>, vector<64x128xf32>
    %cst_100 = arith.constant dense<0xFF800000> : vector<64xf32>
    %245 = vector.multi_reduction <maximumf>, %244, %cst_100 [1] : vector<64x128xf32> to vector<64xf32>
    %246 = vector.shape_cast %245 : vector<64xf32> to vector<64x1xf32>
    %cst_101 = arith.constant 0.000000e+00 : f32
    %247 = vector.shape_cast %246 : vector<64x1xf32> to vector<64x1xf32>
    %248 = vector.broadcast %247 : vector<64x1xf32> to vector<64x128xf32>
    %249 = vector.broadcast %cst_101 : f32 to vector<64x128xf32>
    %250 = arith.select %238, %248, %249 : vector<64x128xi1>, vector<64x128xf32>
    %251 = vector.shape_cast %242 : vector<64x1xf32> to vector<64x1xf32>
    %252 = vector.broadcast %251 : vector<64x1xf32> to vector<64x128xf32>
    %253 = arith.select %223, %252, %250 : vector<64x128xi1>, vector<64x128xf32>
    %254 = arith.subf %220, %253 : vector<64x128xf32>
    %255 = math.exp %254 : vector<64x128xf32>
    %256 = math.tanh %220 : vector<64x128xf32>
    %cst_102 = arith.constant 0.000000e+00 : f32
    %257 = vector.broadcast %cst_102 : f32 to vector<64x128xf32>
    %258 = arith.select %223, %255, %257 : vector<64x128xi1>, vector<64x128xf32>
    %cst_103 = arith.constant dense<0.000000e+00> : vector<64xf32>
    %259 = vector.multi_reduction <add>, %258, %cst_103 [1] : vector<64x128xf32> to vector<64xf32>
    %260 = vector.shape_cast %259 : vector<64xf32> to vector<64x1xf32>
    %cst_104 = arith.constant 0.000000e+00 : f32
    %261 = vector.broadcast %cst_104 : f32 to vector<64x128xf32>
    %262 = arith.select %238, %255, %261 : vector<64x128xi1>, vector<64x128xf32>
    %cst_105 = arith.constant dense<0.000000e+00> : vector<64xf32>
    %263 = vector.multi_reduction <add>, %262, %cst_105 [1] : vector<64x128xf32> to vector<64xf32>
    %264 = vector.shape_cast %263 : vector<64xf32> to vector<64x1xf32>
    %265 = arith.select %228, %255, %220 : vector<64x128xi1>, vector<64x128xf32>
    %266 = arith.select %233, %256, %265 : vector<64x128xi1>, vector<64x128xf32>
    %267 = tpu.reciprocal %260 {approx = true} : vector<64x1xf32> -> vector<64x1xf32>
    %268 = vector.broadcast %267 : vector<64x1xf32> to vector<64x128xf32>
    %269 = arith.mulf %255, %268 : vector<64x128xf32>
    %270 = arith.select %223, %269, %266 : vector<64x128xi1>, vector<64x128xf32>
    %271 = tpu.reciprocal %264 {approx = true} : vector<64x1xf32> -> vector<64x1xf32>
    %272 = vector.broadcast %271 : vector<64x1xf32> to vector<64x128xf32>
    %273 = arith.mulf %255, %272 : vector<64x128xf32>
    %274 = arith.select %238, %273, %270 : vector<64x128xi1>, vector<64x128xf32>
    %c0_106 = arith.constant 0 : index
    %c0_107 = arith.constant 0 : index
    %275 = vector.load %arg4[%c0_106, %c0_107] : memref<64x128xf32, #tpu.memory_space<vmem>>, vector<64x128xf32>
    tpu.vector_store %arg4[%c0_106, %c0_107], %274 {strides = array<i32>} : memref<64x128xf32, #tpu.memory_space<vmem>>, vector<64x128xf32>,
    return
  }
  func.func @transform_0(%arg0: i32) -> (i32, i32, i32) {
    %c0_i32 = arith.constant 0 : i32
    %c0_i32_0 = arith.constant 0 : i32
    %c0_i32_1 = arith.constant 0 : i32
    %c0_i32_2 = arith.constant 0 : i32
    return %c0_i32, %c0_i32_0, %c0_i32_1 : i32, i32, i32
  }
  func.func @transform_1(%arg0: i32) -> (i32, i32) {
    %c0_i32 = arith.constant 0 : i32
    %c0_i32_0 = arith.constant 0 : i32
    %c0_i32_1 = arith.constant 0 : i32
    return %c0_i32, %c0_i32_0 : i32, i32
  }
  func.func @transform_2(%arg0: i32) -> (i32, i32) {
    %c0_i32 = arith.constant 0 : i32
    %c0_i32_0 = arith.constant 0 : i32
    %c0_i32_1 = arith.constant 0 : i32
    return %c0_i32, %c0_i32_0 : i32, i32
  }
  func.func @transform_3(%arg0: i32) -> (i32, i32) {
    %c0_i32 = arith.constant 0 : i32
    %c0_i32_0 = arith.constant 0 : i32
    %c0_i32_1 = arith.constant 0 : i32
    return %c0_i32, %c0_i32_0 : i32, i32
  }
}

</mosaic_0001>

<llo_original>
// kernel: decoder_forward.1
$region0: #{decoder_forward.1}
  #allocation0 [shape = 'u32[]', space=smem, size = 0x4, offset = 0x4, fixed_abs, tag = 'smem constant byte address 0x4 - core index']
  #allocation1 [shape = 'u32[144,128]{1,0:T(1,128)}', space=vmem, size = 0x12000, scoped, tag = 'internal scratch']
  #allocation2 [shape = 'f32[64,24]{1,0:T(8,128)}', space=vmem, size = 0x8000, scoped, tag = 'scratch operand']
  #allocation3 [shape = 'f32[8,16]{1,0:T(8,128)}', space=vmem, size = 0x1000, scoped, tag = 'scratch operand']
  #allocation4 [shape = 'f32[64,32]{1,0:T(8,128)}', space=vmem, size = 0x8000, scoped, tag = 'scratch operand']
  %s0 = inlined_call_operand.vmem [shape: f32[8,7,21], index: 0, kind: input, shape index: {}]
  %s1 = inlined_call_operand.vmem [shape: f32[7,16], index: 1, kind: input, shape index: {}]
  %s2 = inlined_call_operand.vmem [shape: f32[112,128], index: 2, kind: input, shape index: {}]
  %s3 = inlined_call_operand.vmem [shape: f32[64,128], index: 3, kind: output, shape index: {}]
  %s4 = sld [smem:[#allocation0]]
  $region22: #{decoder_forward.1} parent=0
    _
  %s6 = ssub.s32 1, %s4
  %s7 = scalar_select 0, %s6, %s4
  // Predicated region
  $region2: #{decoder_forward.1} parent=0 // pred_check
    _
  $region3: #{decoder_forward.1} parent=0 // pred_check_branch
    %9 = sbr.rel (0) target = $region5
  $region4: #{decoder_forward.1} parent=0 // pred_region
    _
  $region5: #{decoder_forward.1} parent=0 // pred_fallthru
    _
  // Predicated region
  $region6: #{decoder_forward.1} parent=0 // pred_check
    _
  $region7: #{decoder_forward.1} parent=0 // pred_check_branch
    %11 = sbr.rel (0) target = $region9
  $region8: #{decoder_forward.1} parent=0 // pred_region
    _
  $region9: #{decoder_forward.1} parent=0 // pred_fallthru
    _
  // Predicated region
  $region10: #{decoder_forward.1} parent=0 // pred_check
    _
  $region11: #{decoder_forward.1} parent=0 // pred_check_branch
    %13 = sbr.rel (0) target = $region13
  $region12: #{decoder_forward.1} parent=0 // pred_region
    _
  $region13: #{decoder_forward.1} parent=0 // pred_fallthru
    _
  %vm14 = vcmask 195584
  %15 = vst.msk [vmem:[#allocation2] sm:$0xff] %vm14, 0.0
  %16 = vst.msk [vmem:[#allocation2 + $0x8] sm:$0xff] %vm14, 0.0
  %17 = vst.msk [vmem:[#allocation2 + $0x10] sm:$0xff] %vm14, 0.0
  %18 = vst.msk [vmem:[#allocation2 + $0x18] sm:$0xff] %vm14, 0.0
  %19 = vst.msk [vmem:[#allocation2 + $0x20] sm:$0xff] %vm14, 0.0
  %20 = vst.msk [vmem:[#allocation2 + $0x28] sm:$0xff] %vm14, 0.0
  %21 = vst.msk [vmem:[#allocation2 + $0x30] sm:$0xff] %vm14, 0.0
  %22 = vst.msk [vmem:[#allocation2 + $0x38] sm:$0xff] %vm14, 0.0
  %vm23 = vcmask 130048
  %24 = vst.msk [vmem:[#allocation3] sm:$0xff] %vm23, 0.0
  %v25 = vld [vmem:[%s1] sm:$0x7f]
  %vm26 = vcmask 129024
  %27 = vst.msk [vmem:[#allocation3] sm:$0x7f] %vm26, %v25
  %v28 = vld [vmem:[%s0] sm:$0x7f]
  %vm29 = vcmask 169984
  %30 = vst.msk [vmem:[#allocation2] sm:$0x7f] %vm29, %v28
  %s31 = scalar_lea.vmem %s0, 8
  %v32 = vld [vmem:[%s31] sm:$0x7f]
  %33 = vst.msk [vmem:[#allocation2 + $0x8] sm:$0x7f] %vm29, %v32
  %s34 = scalar_lea.vmem %s0, 16
  %v35 = vld [vmem:[%s34] sm:$0x7f]
  %36 = vst.msk [vmem:[#allocation2 + $0x10] sm:$0x7f] %vm29, %v35
  %s37 = scalar_lea.vmem %s0, 24
  %v38 = vld [vmem:[%s37] sm:$0x7f]
  %39 = vst.msk [vmem:[#allocation2 + $0x18] sm:$0x7f] %vm29, %v38
  %s40 = scalar_lea.vmem %s0, 32
  %v41 = vld [vmem:[%s40] sm:$0x7f]
  %42 = vst.msk [vmem:[#allocation2 + $0x20] sm:$0x7f] %vm29, %v41
  %s43 = scalar_lea.vmem %s0, 40
  %v44 = vld [vmem:[%s43] sm:$0x7f]
  %45 = vst.msk [vmem:[#allocation2 + $0x28] sm:$0x7f] %vm29, %v44
  %s46 = scalar_lea.vmem %s0, 48
  %v47 = vld [vmem:[%s46] sm:$0x7f]
  %48 = vst.msk [vmem:[#allocation2 + $0x30] sm:$0x7f] %vm29, %v47
  %s49 = scalar_lea.vmem %s0, 56
  %v50 = vld [vmem:[%s49] sm:$0x7f]
  %51 = vst.msk [vmem:[#allocation2 + $0x38] sm:$0x7f] %vm29, %v50
  %v52 = vld [vmem:[%s2] sm:$0xff]
  %v53 = vld [vmem:[%s2 + $0x8] sm:$0xff]
  %v54 = vld [vmem:[%s2 + $0x10] sm:$0xff]
  %v55 = vld [vmem:[%s2 + $0x18] sm:$0xff]
  %v56 = vld [vmem:[%s2 + $0x20] sm:$0xff]
  %v57 = vld [vmem:[%s2 + $0x28] sm:$0xff]
  %v58 = vld [vmem:[%s2 + $0x30] sm:$0xff]
  %v59 = vld [vmem:[%s2 + $0x38] sm:$0xff]
  %v60 = vld [vmem:[%s2 + $0x40] sm:$0xff]
  %v61 = vld [vmem:[%s2 + $0x68] sm:$0x1]
  %v62 = vld [vmem:[%s2 + $0x69] sm:$0x1]
  %v63 = vld [vmem:[#allocation3] sm:$0xff]
  %v64 = vlaneseq
  %v65 = vshrl.u32 %v64, 7
  %v66 = vsub.s32 0, %v65
  %v67 = vrot.slane %v61, %v66
  %v69 = vsel %vm23, %v63, 0
  %71 = vmatprep.subr.mxu0 0.0
  %72 = vmatpush1.msra.mxu0 %v52
  %73 = vmatprep.subr.mxu0 0.0
  %74 = vmatpush1.msra.mxu0 %v53
  %75 = vmatprep.subr.mxu0 0.0
  %76 = vmatpush1.msra.mxu0 0.0
  %77 = vmatprep.subr.mxu0 0.0
  %78 = vmatpush1.msra.mxu0 0.0
  %79 = vmatprep.subr.mxu0 0.0
  %80 = vmatpush1.msra.mxu0 0.0
  %81 = vmatprep.subr.mxu0 0.0
  %82 = vmatpush1.msra.mxu0 0.0
  %83 = vmatprep.subr.mxu0 0.0
  %84 = vmatpush1.msra.mxu0 0.0
  %85 = vmatprep.subr.mxu0 0.0
  %86 = vmatpush1.msra.mxu0 0.0
  %87 = vmatprep.subr.mxu0 0.0
  %88 = vmatpush1.msra.mxu0 0.0
  %89 = vmatprep.subr.mxu0 0.0
  %90 = vmatpush1.msra.mxu0 0.0
  %91 = vmatprep.subr.mxu0 0.0
  %92 = vmatpush1.msra.mxu0 0.0
  %93 = vmatprep.subr.mxu0 0.0
  %94 = vmatpush1.msra.mxu0 0.0
  %95 = vmatprep.subr.mxu0 0.0
  %96 = vmatpush1.msra.mxu0 0.0
  %97 = vmatprep.subr.mxu0 0.0
  %98 = vmatpush1.msra.mxu0 0.0
  %99 = vmatprep.subr.mxu0 0.0
  %100 = vmatpush1.msra.mxu0 0.0
  %101 = vmatprep.subr.mxu0 0.0
  %102 = vmatpush1.msra.mxu0 0.0
  %103 = vmatprep.subr.mxu0 0.0
  %104 = vmatpush1.msra.mxu0 0.0
  %105 = vmatprep.subr.mxu0 0.0
  %106 = vmatpush1.msra.mxu0 0.0
  %107 = vmatprep.subr.mxu0 0.0
  %108 = vmatpush1.msra.mxu0 0.0
  %109 = vmatprep.subr.mxu0 0.0
  %110 = vmatpush1.msra.mxu0 0.0
  %111 = vmatprep.subr.mxu0 0.0
  %112 = vmatpush1.msra.mxu0 0.0
  %113 = vmatprep.subr.mxu0 0.0
  %114 = vmatpush1.msra.mxu0 0.0
  %115 = vmatprep.subr.mxu0 0.0
  %116 = vmatpush1.msra.mxu0 0.0
  %117 = vmatprep.subr.mxu0 0.0
  %118 = vmatpush1.msra.mxu0 0.0
  %119 = vmatprep.subr.mxu0 0.0
  %120 = vmatpush1.msra.mxu0 0.0
  %121 = vmatprep.subr.mxu0 0.0
  %122 = vmatpush1.msra.mxu0 0.0
  %123 = vmatprep.subr.mxu0 0.0
  %124 = vmatpush1.msra.mxu0 0.0
  %125 = vmatprep.subr.mxu0 0.0
  %126 = vmatpush1.msra.mxu0 0.0
  %127 = vmatprep.subr.mxu0 0.0
  %128 = vmatpush1.msra.mxu0 0.0
  %129 = vmatprep.subr.mxu0 0.0
  %130 = vmatpush1.msra.mxu0 0.0
  %131 = vmatprep.subr.mxu0 0.0
  %132 = vmatpush1.msra.mxu0 0.0
  %133 = vmatprep.subr.mxu0 0.0
  %134 = vmatpush1.msra.mxu0 0.0
  %135 = vmatprep.mubr.f32.mxu0 0.0
  %136 = vmatmul.mubr.f32.gmra.mrb[0].mxu0 %v69
  %v137 = vpop.f32.mrb[0].mxu0
  %v138 = vadd.f32 %v67, %v137
  %v139 = vpop.f32.mrb[0].mxu0
  %140 = vdwg.mxu0
  %v141 = vtanh.pop %v138
  %v142 = vld [vmem:[#allocation2] sm:$0xff]
  %v143 = vld [vmem:[#allocation2 + $0x8] sm:$0xff]
  %v144 = vld [vmem:[#allocation2 + $0x10] sm:$0xff]
  %v145 = vld [vmem:[#allocation2 + $0x18] sm:$0xff]
  %v146 = vld [vmem:[#allocation2 + $0x20] sm:$0xff]
  %v147 = vld [vmem:[#allocation2 + $0x28] sm:$0xff]
  %v148 = vld [vmem:[#allocation2 + $0x30] sm:$0xff]
  %v149 = vld [vmem:[#allocation2 + $0x38] sm:$0xff]
  %v150 = vlaneseq
  %v151 = vshrl.u32 %v150, 7
  %v152 = vsub.s32 0, %v151
  %v153 = vrot.slane %v62, %v152
  %v155 = vsel %vm14, %v142, 0
  %v158 = vsel %vm14, %v143, 0
  %v161 = vsel %vm14, %v144, 0
  %v164 = vsel %vm14, %v145, 0
  %v167 = vsel %vm14, %v146, 0
  %v170 = vsel %vm14, %v147, 0
  %v173 = vsel %vm14, %v148, 0
  %v176 = vsel %vm14, %v149, 0
  %178 = vmatprep.subr.mxu0 0.0
  %179 = vmatpush1.msra.mxu0 %v54
  %180 = vmatprep.subr.mxu0 0.0
  %181 = vmatpush1.msra.mxu0 %v55
  %182 = vmatprep.subr.mxu0 0.0
  %183 = vmatpush1.msra.mxu0 %v56
  %184 = vmatprep.subr.mxu0 0.0
  %185 = vmatpush1.msra.mxu0 0.0
  %186 = vmatprep.subr.mxu0 0.0
  %187 = vmatpush1.msra.mxu0 0.0
  %188 = vmatprep.subr.mxu0 0.0
  %189 = vmatpush1.msra.mxu0 0.0
  %190 = vmatprep.subr.mxu0 0.0
  %191 = vmatpush1.msra.mxu0 0.0
  %192 = vmatprep.subr.mxu0 0.0
  %193 = vmatpush1.msra.mxu0 0.0
  %194 = vmatprep.subr.mxu0 0.0
  %195 = vmatpush1.msra.mxu0 0.0
  %196 = vmatprep.subr.mxu0 0.0
  %197 = vmatpush1.msra.mxu0 0.0
  %198 = vmatprep.subr.mxu0 0.0
  %199 = vmatpush1.msra.mxu0 0.0
  %200 = vmatprep.subr.mxu0 0.0
  %201 = vmatpush1.msra.mxu0 0.0
  %202 = vmatprep.subr.mxu0 0.0
  %203 = vmatpush1.msra.mxu0 0.0
  %204 = vmatprep.subr.mxu0 0.0
  %205 = vmatpush1.msra.mxu0 0.0
  %206 = vmatprep.subr.mxu0 0.0
  %207 = vmatpush1.msra.mxu0 0.0
  %208 = vmatprep.subr.mxu0 0.0
  %209 = vmatpush1.msra.mxu0 0.0
  %210 = vmatprep.subr.mxu0 0.0
  %211 = vmatpush1.msra.mxu0 0.0
  %212 = vmatprep.subr.mxu0 0.0
  %213 = vmatpush1.msra.mxu0 0.0
  %214 = vmatprep.subr.mxu0 0.0
  %215 = vmatpush1.msra.mxu0 0.0
  %216 = vmatprep.subr.mxu0 0.0
  %217 = vmatpush1.msra.mxu0 0.0
  %218 = vmatprep.subr.mxu0 0.0
  %219 = vmatpush1.msra.mxu0 0.0
  %220 = vmatprep.subr.mxu0 0.0
  %221 = vmatpush1.msra.mxu0 0.0
  %222 = vmatprep.subr.mxu0 0.0
  %223 = vmatpush1.msra.mxu0 0.0
  %224 = vmatprep.subr.mxu0 0.0
  %225 = vmatpush1.msra.mxu0 0.0
  %226 = vmatprep.subr.mxu0 0.0
  %227 = vmatpush1.msra.mxu0 0.0
  %228 = vmatprep.subr.mxu0 0.0
  %229 = vmatpush1.msra.mxu0 0.0
  %230 = vmatprep.subr.mxu0 0.0
  %231 = vmatpush1.msra.mxu0 0.0
  %232 = vmatprep.subr.mxu0 0.0
  %233 = vmatpush1.msra.mxu0 0.0
  %234 = vmatprep.subr.mxu0 0.0
  %235 = vmatpush1.msra.mxu0 0.0
  %236 = vmatprep.subr.mxu0 0.0
  %237 = vmatpush1.msra.mxu0 0.0
  %238 = vmatprep.subr.mxu0 0.0
  %239 = vmatpush1.msra.mxu0 0.0
  %240 = vmatprep.subr.mxu0 0.0
  %241 = vmatpush1.msra.mxu0 0.0
  %242 = vmatprep.mubr.f32.mxu0 0.0
  %243 = vmatmul.mubr.f32.gmra.mrb[0].mxu0 %v155
  %v244 = vpop.f32.mrb[0].mxu0
  %v245 = vadd.f32 %v153, %v244
  %v246 = vpop.f32.mrb[0].mxu0
  %247 = vmatprep.mubr.f32.mxu0 0.0
  %248 = vmatmul.mubr.f32.gmra.mrb[0].mxu0 %v158
  %v249 = vpop.f32.mrb[0].mxu0
  %v250 = vadd.f32 %v153, %v249
  %v251 = vpop.f32.mrb[0].mxu0
  %252 = vmatprep.mubr.f32.mxu0 0.0
  %253 = vmatmul.mubr.f32.gmra.mrb[0].mxu0 %v161
  %v254 = vpop.f32.mrb[0].mxu0
  %v255 = vadd.f32 %v153, %v254
  %v256 = vpop.f32.mrb[0].mxu0
  %257 = vmatprep.mubr.f32.mxu0 0.0
  %258 = vmatmul.mubr.f32.gmra.mrb[0].mxu0 %v164
  %v259 = vpop.f32.mrb[0].mxu0
  %v260 = vadd.f32 %v153, %v259
  %v261 = vpop.f32.mrb[0].mxu0
  %262 = vmatprep.mubr.f32.mxu0 0.0
  %263 = vmatmul.mubr.f32.gmra.mrb[0].mxu0 %v167
  %v264 = vpop.f32.mrb[0].mxu0
  %v265 = vadd.f32 %v153, %v264
  %v266 = vpop.f32.mrb[0].mxu0
  %267 = vmatprep.mubr.f32.mxu0 0.0
  %268 = vmatmul.mubr.f32.gmra.mrb[0].mxu0 %v170
  %v269 = vpop.f32.mrb[0].mxu0
  %v270 = vadd.f32 %v153, %v269
  %v271 = vpop.f32.mrb[0].mxu0
  %272 = vmatprep.mubr.f32.mxu0 0.0
  %273 = vmatmul.mubr.f32.gmra.mrb[0].mxu0 %v173
  %v274 = vpop.f32.mrb[0].mxu0
  %v275 = vadd.f32 %v153, %v274
  %v276 = vpop.f32.mrb[0].mxu0
  %277 = vmatprep.mubr.f32.mxu0 0.0
  %278 = vmatmul.mubr.f32.gmra.mrb[0].mxu0 %v176
  %v279 = vpop.f32.mrb[0].mxu0
  %v280 = vadd.f32 %v153, %v279
  %v281 = vpop.f32.mrb[0].mxu0
  %282 = vdwg.mxu0
  %v283 = vlaneseq
  %v284 = vand.u32 %v283, 127
  %vm285 = vcmp.ge.s32.totalorder %v284, 64
  %vm286 = vcmp.lt.s32.totalorder %v284, 96
  %vm287 = vmand %vm285, %vm286
  %v288 = vsel %vm287, 1.0, 0.5
  %vm289 = vcmask 261120
  %v291 = vsel %vm289, %v141, 0
  %293 = vmatprep.subr.mxu0 0.0
  %294 = vmatpush1.msra.mxu0 %v57
  %295 = vmatprep.subr.mxu0 0.0
  %296 = vmatpush1.msra.mxu0 %v58
  %297 = vmatprep.subr.mxu0 0.0
  %298 = vmatpush1.msra.mxu0 %v59
  %299 = vmatprep.subr.mxu0 0.0
  %300 = vmatpush1.msra.mxu0 %v60
  %301 = vmatprep.subr.mxu0 0.0
  %302 = vmatpush1.msra.mxu0 0.0
  %303 = vmatprep.subr.mxu0 0.0
  %304 = vmatpush1.msra.mxu0 0.0
  %305 = vmatprep.subr.mxu0 0.0
  %306 = vmatpush1.msra.mxu0 0.0
  %307 = vmatprep.subr.mxu0 0.0
  %308 = vmatpush1.msra.mxu0 0.0
  %309 = vmatprep.subr.mxu0 0.0
  %310 = vmatpush1.msra.mxu0 0.0
  %311 = vmatprep.subr.mxu0 0.0
  %312 = vmatpush1.msra.mxu0 0.0
  %313 = vmatprep.subr.mxu0 0.0
  %314 = vmatpush1.msra.mxu0 0.0
  %315 = vmatprep.subr.mxu0 0.0
  %316 = vmatpush1.msra.mxu0 0.0
  %317 = vmatprep.subr.mxu0 0.0
  %318 = vmatpush1.msra.mxu0 0.0
  %319 = vmatprep.subr.mxu0 0.0
  %320 = vmatpush1.msra.mxu0 0.0
  %321 = vmatprep.subr.mxu0 0.0
  %322 = vmatpush1.msra.mxu0 0.0
  %323 = vmatprep.subr.mxu0 0.0
  %324 = vmatpush1.msra.mxu0 0.0
  %325 = vmatprep.subr.mxu0 0.0
  %326 = vmatpush1.msra.mxu0 0.0
  %327 = vmatprep.subr.mxu0 0.0
  %328 = vmatpush1.msra.mxu0 0.0
  %329 = vmatprep.subr.mxu0 0.0
  %330 = vmatpush1.msra.mxu0 0.0
  %331 = vmatprep.subr.mxu0 0.0
  %332 = vmatpush1.msra.mxu0 0.0
  %333 = vmatprep.subr.mxu0 0.0
  %334 = vmatpush1.msra.mxu0 0.0
  %335 = vmatprep.subr.mxu0 0.0
  %336 = vmatpush1.msra.mxu0 0.0
  %337 = vmatprep.subr.mxu0 0.0
  %338 = vmatpush1.msra.mxu0 0.0
  %339 = vmatprep.subr.mxu0 0.0
  %340 = vmatpush1.msra.mxu0 0.0
  %341 = vmatprep.subr.mxu0 0.0
  %342 = vmatpush1.msra.mxu0 0.0
  %343 = vmatprep.subr.mxu0 0.0
  %344 = vmatpush1.msra.mxu0 0.0
  %345 = vmatprep.subr.mxu0 0.0
  %346 = vmatpush1.msra.mxu0 0.0
  %347 = vmatprep.subr.mxu0 0.0
  %348 = vmatpush1.msra.mxu0 0.0
  %349 = vmatprep.subr.mxu0 0.0
  %350 = vmatpush1.msra.mxu0 0.0
  %351 = vmatprep.subr.mxu0 0.0
  %352 = vmatpush1.msra.mxu0 0.0
  %353 = vmatprep.subr.mxu0 0.0
  %354 = vmatpush1.msra.mxu0 0.0
  %355 = vmatprep.subr.mxu0 0.0
  %356 = vmatpush1.msra.mxu0 0.0
  %357 = vmatprep.mubr.f32.mxu0 0.0
  %358 = vmatmul.mubr.f32.gmra.mrb[0].mxu0 %v291
  %v359 = vpop.f32.mrb[0].mxu0
  %v360 = vadd.f32 0.0, %v359
  %v361 = vpop.f32.mrb[0].mxu0
  %362 = vdwg.mxu0
  %v363 = vadd.f32 %v245, %v360
  %v364 = vmul.f32 %v363, %v288
  %v365 = vtanh.pop %v364
  %v366 = vmul.f32 %v365, 0.5
  %v367 = vadd.f32 %v366, 0.5
  %v368 = vsel %vm287, %v365, %v367
  %v369 = vmul.f32 %v368, %v141
  %371 = vrot.lane.b32.xlu0 %v368, 64
  %v372 = vpop.permute.xlu0 %371
  %v374 = vmul.f32 %v368, %v372
  %376 = vrot.lane.b32.xlu0 %v374, 32
  %v377 = vpop.permute.xlu0 %376
  %v379 = vadd.f32 %v369, %v377
  %v380 = vtanh.pop %v379
  %382 = vrot.lane.b32.xlu0 %v380, 64
  %v383 = vpop.permute.xlu0 %382
  %v385 = vmul.f32 %v368, %v383
  %387 = vrot.lane.b32.xlu0 %v385, 32
  %v388 = vpop.permute.xlu0 %387
  %390 = vst.msk [vmem:[#allocation4] sm:$0xff] %vm289, %v388
  %v391 = vsel %vm289, %v388, 0
  %393 = vmatprep.subr.mxu0 0.0
  %394 = vmatpush1.msra.mxu0 %v57
  %395 = vmatprep.subr.mxu0 0.0
  %396 = vmatpush1.msra.mxu0 %v58
  %397 = vmatprep.subr.mxu0 0.0
  %398 = vmatpush1.msra.mxu0 %v59
  %399 = vmatprep.subr.mxu0 0.0
  %400 = vmatpush1.msra.mxu0 %v60
  %401 = vmatprep.subr.mxu0 0.0
  %402 = vmatpush1.msra.mxu0 0.0
  %403 = vmatprep.subr.mxu0 0.0
  %404 = vmatpush1.msra.mxu0 0.0
  %405 = vmatprep.subr.mxu0 0.0
  %406 = vmatpush1.msra.mxu0 0.0
  %407 = vmatprep.subr.mxu0 0.0
  %408 = vmatpush1.msra.mxu0 0.0
  %409 = vmatprep.subr.mxu0 0.0
  %410 = vmatpush1.msra.mxu0 0.0
  %411 = vmatprep.subr.mxu0 0.0
  %412 = vmatpush1.msra.mxu0 0.0
  %413 = vmatprep.subr.mxu0 0.0
  %414 = vmatpush1.msra.mxu0 0.0
  %415 = vmatprep.subr.mxu0 0.0
  %416 = vmatpush1.msra.mxu0 0.0
  %417 = vmatprep.subr.mxu0 0.0
  %418 = vmatpush1.msra.mxu0 0.0
  %419 = vmatprep.subr.mxu0 0.0
  %420 = vmatpush1.msra.mxu0 0.0
  %421 = vmatprep.subr.mxu0 0.0
  %422 = vmatpush1.msra.mxu0 0.0
  %423 = vmatprep.subr.mxu0 0.0
  %424 = vmatpush1.msra.mxu0 0.0
  %425 = vmatprep.subr.mxu0 0.0
  %426 = vmatpush1.msra.mxu0 0.0
  %427 = vmatprep.subr.mxu0 0.0
  %428 = vmatpush1.msra.mxu0 0.0
  %429 = vmatprep.subr.mxu0 0.0
  %430 = vmatpush1.msra.mxu0 0.0
  %431 = vmatprep.subr.mxu0 0.0
  %432 = vmatpush1.msra.mxu0 0.0
  %433 = vmatprep.subr.mxu0 0.0
  %434 = vmatpush1.msra.mxu0 0.0
  %435 = vmatprep.subr.mxu0 0.0
  %436 = vmatpush1.msra.mxu0 0.0
  %437 = vmatprep.subr.mxu0 0.0
  %438 = vmatpush1.msra.mxu0 0.0
  %439 = vmatprep.subr.mxu0 0.0
  %440 = vmatpush1.msra.mxu0 0.0
  %441 = vmatprep.subr.mxu0 0.0
  %442 = vmatpush1.msra.mxu0 0.0
  %443 = vmatprep.subr.mxu0 0.0
  %444 = vmatpush1.msra.mxu0 0.0
  %445 = vmatprep.subr.mxu0 0.0
  %446 = vmatpush1.msra.mxu0 0.0
  %447 = vmatprep.subr.mxu0 0.0
  %448 = vmatpush1.msra.mxu0 0.0
  %449 = vmatprep.subr.mxu0 0.0
  %450 = vmatpush1.msra.mxu0 0.0
  %451 = vmatprep.subr.mxu0 0.0
  %452 = vmatpush1.msra.mxu0 0.0
  %453 = vmatprep.subr.mxu0 0.0
  %454 = vmatpush1.msra.mxu0 0.0
  %455 = vmatprep.subr.mxu0 0.0
  %456 = vmatpush1.msra.mxu0 0.0
  %457 = vmatprep.mubr.f32.mxu0 0.0
  %458 = vmatmul.mubr.f32.gmra.mrb[0].mxu0 %v391
  %v459 = vpop.f32.mrb[0].mxu0
  %v460 = vadd.f32 0.0, %v459
  %v461 = vpop.f32.mrb[0].mxu0
  %462 = vdwg.mxu0
  %v463 = vadd.f32 %v250, %v460
  %v464 = vmul.f32 %v463, %v288
  %v465 = vtanh.pop %v464
  %v466 = vmul.f32 %v465, 0.5
  %v467 = vadd.f32 %v466, 0.5
  %v468 = vsel %vm287, %v465, %v467
  %v469 = vmul.f32 %v468, %v379
  %471 = vrot.lane.b32.xlu0 %v468, 64
  %v472 = vpop.permute.xlu0 %471
  %v474 = vmul.f32 %v468, %v472
  %476 = vrot.lane.b32.xlu0 %v474, 32
  %v477 = vpop.permute.xlu0 %476
  %v479 = vadd.f32 %v469, %v477
  %v480 = vtanh.pop %v479
  %482 = vrot.lane.b32.xlu0 %v480, 64
  %v483 = vpop.permute.xlu0 %482
  %v485 = vmul.f32 %v468, %v483
  %487 = vrot.lane.b32.xlu0 %v485, 32
  %v488 = vpop.permute.xlu0 %487
  %490 = vst.msk [vmem:[#allocation4 + $0x8] sm:$0xff] %vm289, %v488
  %v491 = vsel %vm289, %v488, 0
  %493 = vmatprep.subr.mxu0 0.0
  %494 = vmatpush1.msra.mxu0 %v57
  %495 = vmatprep.subr.mxu0 0.0
  %496 = vmatpush1.msra.mxu0 %v58
  %497 = vmatprep.subr.mxu0 0.0
  %498 = vmatpush1.msra.mxu0 %v59
  %499 = vmatprep.subr.mxu0 0.0
  %500 = vmatpush1.msra.mxu0 %v60
  %501 = vmatprep.subr.mxu0 0.0
  %502 = vmatpush1.msra.mxu0 0.0
  %503 = vmatprep.subr.mxu0 0.0
  %504 = vmatpush1.msra.mxu0 0.0
  %505 = vmatprep.subr.mxu0 0.0
  %506 = vmatpush1.msra.mxu0 0.0
  %507 = vmatprep.subr.mxu0 0.0
  %508 = vmatpush1.msra.mxu0 0.0
  %509 = vmatprep.subr.mxu0 0.0
  %510 = vmatpush1.msra.mxu0 0.0
  %511 = vmatprep.subr.mxu0 0.0
  %512 = vmatpush1.msra.mxu0 0.0
  %513 = vmatprep.subr.mxu0 0.0
  %514 = vmatpush1.msra.mxu0 0.0
  %515 = vmatprep.subr.mxu0 0.0
  %516 = vmatpush1.msra.mxu0 0.0
  %517 = vmatprep.subr.mxu0 0.0
  %518 = vmatpush1.msra.mxu0 0.0
  %519 = vmatprep.subr.mxu0 0.0
  %520 = vmatpush1.msra.mxu0 0.0
  %521 = vmatprep.subr.mxu0 0.0
  %522 = vmatpush1.msra.mxu0 0.0
  %523 = vmatprep.subr.mxu0 0.0
  %524 = vmatpush1.msra.mxu0 0.0
  %525 = vmatprep.subr.mxu0 0.0
  %526 = vmatpush1.msra.mxu0 0.0
  %527 = vmatprep.subr.mxu0 0.0
  %528 = vmatpush1.msra.mxu0 0.0
  %529 = vmatprep.subr.mxu0 0.0
  %530 = vmatpush1.msra.mxu0 0.0
  %531 = vmatprep.subr.mxu0 0.0
  %532 = vmatpush1.msra.mxu0 0.0
  %533 = vmatprep.subr.mxu0 0.0
  %534 = vmatpush1.msra.mxu0 0.0
  %535 = vmatprep.subr.mxu0 0.0
  %536 = vmatpush1.msra.mxu0 0.0
  %537 = vmatprep.subr.mxu0 0.0
  %538 = vmatpush1.msra.mxu0 0.0
  %539 = vmatprep.subr.mxu0 0.0
  %540 = vmatpush1.msra.mxu0 0.0
  %541 = vmatprep.subr.mxu0 0.0
  %542 = vmatpush1.msra.mxu0 0.0
  %543 = vmatprep.subr.mxu0 0.0
  %544 = vmatpush1.msra.mxu0 0.0
  %545 = vmatprep.subr.mxu0 0.0
  %546 = vmatpush1.msra.mxu0 0.0
  %547 = vmatprep.subr.mxu0 0.0
  %548 = vmatpush1.msra.mxu0 0.0
  %549 = vmatprep.subr.mxu0 0.0
  %550 = vmatpush1.msra.mxu0 0.0
  %551 = vmatprep.subr.mxu0 0.0
  %552 = vmatpush1.msra.mxu0 0.0
  %553 = vmatprep.subr.mxu0 0.0
  %554 = vmatpush1.msra.mxu0 0.0
  %555 = vmatprep.subr.mxu0 0.0
  %556 = vmatpush1.msra.mxu0 0.0
  %557 = vmatprep.mubr.f32.mxu0 0.0
  %558 = vmatmul.mubr.f32.gmra.mrb[0].mxu0 %v491
  %v559 = vpop.f32.mrb[0].mxu0
  %v560 = vadd.f32 0.0, %v559
  %v561 = vpop.f32.mrb[0].mxu0
  %562 = vdwg.mxu0
  %v563 = vadd.f32 %v255, %v560
  %v564 = vmul.f32 %v563, %v288
  %v565 = vtanh.pop %v564
  %v566 = vmul.f32 %v565, 0.5
  %v567 = vadd.f32 %v566, 0.5
  %v568 = vsel %vm287, %v565, %v567
  %v569 = vmul.f32 %v568, %v479
  %571 = vrot.lane.b32.xlu0 %v568, 64
  %v572 = vpop.permute.xlu0 %571
  %v574 = vmul.f32 %v568, %v572
  %576 = vrot.lane.b32.xlu0 %v574, 32
  %v577 = vpop.permute.xlu0 %576
  %v579 = vadd.f32 %v569, %v577
  %v580 = vtanh.pop %v579
  %582 = vrot.lane.b32.xlu0 %v580, 64
  %v583 = vpop.permute.xlu0 %582
  %v585 = vmul.f32 %v568, %v583
  %587 = vrot.lane.b32.xlu0 %v585, 32
  %v588 = vpop.permute.xlu0 %587
  %590 = vst.msk [vmem:[#allocation4 + $0x10] sm:$0xff] %vm289, %v588
  %v591 = vsel %vm289, %v588, 0
  %593 = vmatprep.subr.mxu0 0.0
  %594 = vmatpush1.msra.mxu0 %v57
  %595 = vmatprep.subr.mxu0 0.0
  %596 = vmatpush1.msra.mxu0 %v58
  %597 = vmatprep.subr.mxu0 0.0
  %598 = vmatpush1.msra.mxu0 %v59
  %599 = vmatprep.subr.mxu0 0.0
  %600 = vmatpush1.msra.mxu0 %v60
  %601 = vmatprep.subr.mxu0 0.0
  %602 = vmatpush1.msra.mxu0 0.0
  %603 = vmatprep.subr.mxu0 0.0
  %604 = vmatpush1.msra.mxu0 0.0
  %605 = vmatprep.subr.mxu0 0.0
  %606 = vmatpush1.msra.mxu0 0.0
  %607 = vmatprep.subr.mxu0 0.0
  %608 = vmatpush1.msra.mxu0 0.0
  %609 = vmatprep.subr.mxu0 0.0
  %610 = vmatpush1.msra.mxu0 0.0
  %611 = vmatprep.subr.mxu0 0.0
  %612 = vmatpush1.msra.mxu0 0.0
  %613 = vmatprep.subr.mxu0 0.0
  %614 = vmatpush1.msra.mxu0 0.0
  %615 = vmatprep.subr.mxu0 0.0
  %616 = vmatpush1.msra.mxu0 0.0
  %617 = vmatprep.subr.mxu0 0.0
  %618 = vmatpush1.msra.mxu0 0.0
  %619 = vmatprep.subr.mxu0 0.0
  %620 = vmatpush1.msra.mxu0 0.0
  %621 = vmatprep.subr.mxu0 0.0
  %622 = vmatpush1.msra.mxu0 0.0
  %623 = vmatprep.subr.mxu0 0.0
  %624 = vmatpush1.msra.mxu0 0.0
  %625 = vmatprep.subr.mxu0 0.0
  %626 = vmatpush1.msra.mxu0 0.0
  %627 = vmatprep.subr.mxu0 0.0
  %628 = vmatpush1.msra.mxu0 0.0
  %629 = vmatprep.subr.mxu0 0.0
  %630 = vmatpush1.msra.mxu0 0.0
  %631 = vmatprep.subr.mxu0 0.0
  %632 = vmatpush1.msra.mxu0 0.0
  %633 = vmatprep.subr.mxu0 0.0
  %634 = vmatpush1.msra.mxu0 0.0
  %635 = vmatprep.subr.mxu0 0.0
  %636 = vmatpush1.msra.mxu0 0.0
  %637 = vmatprep.subr.mxu0 0.0
  %638 = vmatpush1.msra.mxu0 0.0
  %639 = vmatprep.subr.mxu0 0.0
  %640 = vmatpush1.msra.mxu0 0.0
  %641 = vmatprep.subr.mxu0 0.0
  %642 = vmatpush1.msra.mxu0 0.0
  %643 = vmatprep.subr.mxu0 0.0
  %644 = vmatpush1.msra.mxu0 0.0
  %645 = vmatprep.subr.mxu0 0.0
  %646 = vmatpush1.msra.mxu0 0.0
  %647 = vmatprep.subr.mxu0 0.0
  %648 = vmatpush1.msra.mxu0 0.0
  %649 = vmatprep.subr.mxu0 0.0
  %650 = vmatpush1.msra.mxu0 0.0
  %651 = vmatprep.subr.mxu0 0.0
  %652 = vmatpush1.msra.mxu0 0.0
  %653 = vmatprep.subr.mxu0 0.0
  %654 = vmatpush1.msra.mxu0 0.0
  %655 = vmatprep.subr.mxu0 0.0
  %656 = vmatpush1.msra.mxu0 0.0
  %657 = vmatprep.mubr.f32.mxu0 0.0
  %658 = vmatmul.mubr.f32.gmra.mrb[0].mxu0 %v591
  %v659 = vpop.f32.mrb[0].mxu0
  %v660 = vadd.f32 0.0, %v659
  %v661 = vpop.f32.mrb[0].mxu0
  %662 = vdwg.mxu0
  %v663 = vadd.f32 %v260, %v660
  %v664 = vmul.f32 %v663, %v288
  %v665 = vtanh.pop %v664
  %v666 = vmul.f32 %v665, 0.5
  %v667 = vadd.f32 %v666, 0.5
  %v668 = vsel %vm287, %v665, %v667
  %v669 = vmul.f32 %v668, %v579
  %671 = vrot.lane.b32.xlu0 %v668, 64
  %v672 = vpop.permute.xlu0 %671
  %v674 = vmul.f32 %v668, %v672
  %676 = vrot.lane.b32.xlu0 %v674, 32
  %v677 = vpop.permute.xlu0 %676
  %v679 = vadd.f32 %v669, %v677
  %v680 = vtanh.pop %v679
  %682 = vrot.lane.b32.xlu0 %v680, 64
  %v683 = vpop.permute.xlu0 %682
  %v685 = vmul.f32 %v668, %v683
  %687 = vrot.lane.b32.xlu0 %v685, 32
  %v688 = vpop.permute.xlu0 %687
  %690 = vst.msk [vmem:[#allocation4 + $0x18] sm:$0xff] %vm289, %v688
  %v691 = vsel %vm289, %v688, 0
  %693 = vmatprep.subr.mxu0 0.0
  %694 = vmatpush1.msra.mxu0 %v57
  %695 = vmatprep.subr.mxu0 0.0
  %696 = vmatpush1.msra.mxu0 %v58
  %697 = vmatprep.subr.mxu0 0.0
  %698 = vmatpush1.msra.mxu0 %v59
  %699 = vmatprep.subr.mxu0 0.0
  %700 = vmatpush1.msra.mxu0 %v60
  %701 = vmatprep.subr.mxu0 0.0
  %702 = vmatpush1.msra.mxu0 0.0
  %703 = vmatprep.subr.mxu0 0.0
  %704 = vmatpush1.msra.mxu0 0.0
  %705 = vmatprep.subr.mxu0 0.0
  %706 = vmatpush1.msra.mxu0 0.0
  %707 = vmatprep.subr.mxu0 0.0
  %708 = vmatpush1.msra.mxu0 0.0
  %709 = vmatprep.subr.mxu0 0.0
  %710 = vmatpush1.msra.mxu0 0.0
  %711 = vmatprep.subr.mxu0 0.0
  %712 = vmatpush1.msra.mxu0 0.0
  %713 = vmatprep.subr.mxu0 0.0
  %714 = vmatpush1.msra.mxu0 0.0
  %715 = vmatprep.subr.mxu0 0.0
  %716 = vmatpush1.msra.mxu0 0.0
  %717 = vmatprep.subr.mxu0 0.0
  %718 = vmatpush1.msra.mxu0 0.0
  %719 = vmatprep.subr.mxu0 0.0
  %720 = vmatpush1.msra.mxu0 0.0
  %721 = vmatprep.subr.mxu0 0.0
  %722 = vmatpush1.msra.mxu0 0.0
  %723 = vmatprep.subr.mxu0 0.0
  %724 = vmatpush1.msra.mxu0 0.0
  %725 = vmatprep.subr.mxu0 0.0
  %726 = vmatpush1.msra.mxu0 0.0
  %727 = vmatprep.subr.mxu0 0.0
  %728 = vmatpush1.msra.mxu0 0.0
  %729 = vmatprep.subr.mxu0 0.0
  %730 = vmatpush1.msra.mxu0 0.0
  %731 = vmatprep.subr.mxu0 0.0
  %732 = vmatpush1.msra.mxu0 0.0
  %733 = vmatprep.subr.mxu0 0.0
  %734 = vmatpush1.msra.mxu0 0.0
  %735 = vmatprep.subr.mxu0 0.0
  %736 = vmatpush1.msra.mxu0 0.0
  %737 = vmatprep.subr.mxu0 0.0
  %738 = vmatpush1.msra.mxu0 0.0
  %739 = vmatprep.subr.mxu0 0.0
  %740 = vmatpush1.msra.mxu0 0.0
  %741 = vmatprep.subr.mxu0 0.0
  %742 = vmatpush1.msra.mxu0 0.0
  %743 = vmatprep.subr.mxu0 0.0
  %744 = vmatpush1.msra.mxu0 0.0
  %745 = vmatprep.subr.mxu0 0.0
  %746 = vmatpush1.msra.mxu0 0.0
  %747 = vmatprep.subr.mxu0 0.0
  %748 = vmatpush1.msra.mxu0 0.0
  %749 = vmatprep.subr.mxu0 0.0
  %750 = vmatpush1.msra.mxu0 0.0
  %751 = vmatprep.subr.mxu0 0.0
  %752 = vmatpush1.msra.mxu0 0.0
  %753 = vmatprep.subr.mxu0 0.0
  %754 = vmatpush1.msra.mxu0 0.0
  %755 = vmatprep.subr.mxu0 0.0
  %756 = vmatpush1.msra.mxu0 0.0
  %757 = vmatprep.mubr.f32.mxu0 0.0
  %758 = vmatmul.mubr.f32.gmra.mrb[0].mxu0 %v691
  %v759 = vpop.f32.mrb[0].mxu0
  %v760 = vadd.f32 0.0, %v759
  %v761 = vpop.f32.mrb[0].mxu0
  %762 = vdwg.mxu0
  %v763 = vadd.f32 %v265, %v760
  %v764 = vmul.f32 %v763, %v288
  %v765 = vtanh.pop %v764
  %v766 = vmul.f32 %v765, 0.5
  %v767 = vadd.f32 %v766, 0.5
  %v768 = vsel %vm287, %v765, %v767
  %v769 = vmul.f32 %v768, %v679
  %771 = vrot.lane.b32.xlu0 %v768, 64
  %v772 = vpop.permute.xlu0 %771
  %v774 = vmul.f32 %v768, %v772
  %776 = vrot.lane.b32.xlu0 %v774, 32
  %v777 = vpop.permute.xlu0 %776
  %v779 = vadd.f32 %v769, %v777
  %v780 = vtanh.pop %v779
  %782 = vrot.lane.b32.xlu0 %v780, 64
  %v783 = vpop.permute.xlu0 %782
  %v785 = vmul.f32 %v768, %v783
  %787 = vrot.lane.b32.xlu0 %v785, 32
  %v788 = vpop.permute.xlu0 %787
  %790 = vst.msk [vmem:[#allocation4 + $0x20] sm:$0xff] %vm289, %v788
  %v791 = vsel %vm289, %v788, 0
  %793 = vmatprep.subr.mxu0 0.0
  %794 = vmatpush1.msra.mxu0 %v57
  %795 = vmatprep.subr.mxu0 0.0
  %796 = vmatpush1.msra.mxu0 %v58
  %797 = vmatprep.subr.mxu0 0.0
  %798 = vmatpush1.msra.mxu0 %v59
  %799 = vmatprep.subr.mxu0 0.0
  %800 = vmatpush1.msra.mxu0 %v60
  %801 = vmatprep.subr.mxu0 0.0
  %802 = vmatpush1.msra.mxu0 0.0
  %803 = vmatprep.subr.mxu0 0.0
  %804 = vmatpush1.msra.mxu0 0.0
  %805 = vmatprep.subr.mxu0 0.0
  %806 = vmatpush1.msra.mxu0 0.0
  %807 = vmatprep.subr.mxu0 0.0
  %808 = vmatpush1.msra.mxu0 0.0
  %809 = vmatprep.subr.mxu0 0.0
  %810 = vmatpush1.msra.mxu0 0.0
  %811 = vmatprep.subr.mxu0 0.0
  %812 = vmatpush1.msra.mxu0 0.0
  %813 = vmatprep.subr.mxu0 0.0
  %814 = vmatpush1.msra.mxu0 0.0
  %815 = vmatprep.subr.mxu0 0.0
  %816 = vmatpush1.msra.mxu0 0.0
  %817 = vmatprep.subr.mxu0 0.0
  %818 = vmatpush1.msra.mxu0 0.0
  %819 = vmatprep.subr.mxu0 0.0
  %820 = vmatpush1.msra.mxu0 0.0
  %821 = vmatprep.subr.mxu0 0.0
  %822 = vmatpush1.msra.mxu0 0.0
  %823 = vmatprep.subr.mxu0 0.0
  %824 = vmatpush1.msra.mxu0 0.0
  %825 = vmatprep.subr.mxu0 0.0
  %826 = vmatpush1.msra.mxu0 0.0
  %827 = vmatprep.subr.mxu0 0.0
  %828 = vmatpush1.msra.mxu0 0.0
  %829 = vmatprep.subr.mxu0 0.0
  %830 = vmatpush1.msra.mxu0 0.0
  %831 = vmatprep.subr.mxu0 0.0
  %832 = vmatpush1.msra.mxu0 0.0
  %833 = vmatprep.subr.mxu0 0.0
  %834 = vmatpush1.msra.mxu0 0.0
  %835 = vmatprep.subr.mxu0 0.0
  %836 = vmatpush1.msra.mxu0 0.0
  %837 = vmatprep.subr.mxu0 0.0
  %838 = vmatpush1.msra.mxu0 0.0
  %839 = vmatprep.subr.mxu0 0.0
  %840 = vmatpush1.msra.mxu0 0.0
  %841 = vmatprep.subr.mxu0 0.0
  %842 = vmatpush1.msra.mxu0 0.0
  %843 = vmatprep.subr.mxu0 0.0
  %844 = vmatpush1.msra.mxu0 0.0
  %845 = vmatprep.subr.mxu0 0.0
  %846 = vmatpush1.msra.mxu0 0.0
  %847 = vmatprep.subr.mxu0 0.0
  %848 = vmatpush1.msra.mxu0 0.0
  %849 = vmatprep.subr.mxu0 0.0
  %850 = vmatpush1.msra.mxu0 0.0
  %851 = vmatprep.subr.mxu0 0.0
  %852 = vmatpush1.msra.mxu0 0.0
  %853 = vmatprep.subr.mxu0 0.0
  %854 = vmatpush1.msra.mxu0 0.0
  %855 = vmatprep.subr.mxu0 0.0
  %856 = vmatpush1.msra.mxu0 0.0
  %857 = vmatprep.mubr.f32.mxu0 0.0
  %858 = vmatmul.mubr.f32.gmra.mrb[0].mxu0 %v791
  %v859 = vpop.f32.mrb[0].mxu0
  %v860 = vadd.f32 0.0, %v859
  %v861 = vpop.f32.mrb[0].mxu0
  %862 = vdwg.mxu0
  %v863 = vadd.f32 %v270, %v860
  %v864 = vmul.f32 %v863, %v288
  %v865 = vtanh.pop %v864
  %v866 = vmul.f32 %v865, 0.5
  %v867 = vadd.f32 %v866, 0.5
  %v868 = vsel %vm287, %v865, %v867
  %v869 = vmul.f32 %v868, %v779
  %871 = vrot.lane.b32.xlu0 %v868, 64
  %v872 = vpop.permute.xlu0 %871
  %v874 = vmul.f32 %v868, %v872
  %876 = vrot.lane.b32.xlu0 %v874, 32
  %v877 = vpop.permute.xlu0 %876
  %v879 = vadd.f32 %v869, %v877
  %v880 = vtanh.pop %v879
  %882 = vrot.lane.b32.xlu0 %v880, 64
  %v883 = vpop.permute.xlu0 %882
  %v885 = vmul.f32 %v868, %v883
  %887 = vrot.lane.b32.xlu0 %v885, 32
  %v888 = vpop.permute.xlu0 %887
  %890 = vst.msk [vmem:[#allocation4 + $0x28] sm:$0xff] %vm289, %v888
  %v891 = vsel %vm289, %v888, 0
  %893 = vmatprep.subr.mxu0 0.0
  %894 = vmatpush1.msra.mxu0 %v57
  %895 = vmatprep.subr.mxu0 0.0
  %896 = vmatpush1.msra.mxu0 %v58
  %897 = vmatprep.subr.mxu0 0.0
  %898 = vmatpush1.msra.mxu0 %v59
  %899 = vmatprep.subr.mxu0 0.0
  %900 = vmatpush1.msra.mxu0 %v60
  %901 = vmatprep.subr.mxu0 0.0
  %902 = vmatpush1.msra.mxu0 0.0
  %903 = vmatprep.subr.mxu0 0.0
  %904 = vmatpush1.msra.mxu0 0.0
  %905 = vmatprep.subr.mxu0 0.0
  %906 = vmatpush1.msra.mxu0 0.0
  %907 = vmatprep.subr.mxu0 0.0
  %908 = vmatpush1.msra.mxu0 0.0
  %909 = vmatprep.subr.mxu0 0.0
  %910 = vmatpush1.msra.mxu0 0.0
  %911 = vmatprep.subr.mxu0 0.0
  %912 = vmatpush1.msra.mxu0 0.0
  %913 = vmatprep.subr.mxu0 0.0
  %914 = vmatpush1.msra.mxu0 0.0
  %915 = vmatprep.subr.mxu0 0.0
  %916 = vmatpush1.msra.mxu0 0.0
  %917 = vmatprep.subr.mxu0 0.0
  %918 = vmatpush1.msra.mxu0 0.0
  %919 = vmatprep.subr.mxu0 0.0
  %920 = vmatpush1.msra.mxu0 0.0
  %921 = vmatprep.subr.mxu0 0.0
  %922 = vmatpush1.msra.mxu0 0.0
  %923 = vmatprep.subr.mxu0 0.0
  %924 = vmatpush1.msra.mxu0 0.0
  %925 = vmatprep.subr.mxu0 0.0
  %926 = vmatpush1.msra.mxu0 0.0
  %927 = vmatprep.subr.mxu0 0.0
  %928 = vmatpush1.msra.mxu0 0.0
  %929 = vmatprep.subr.mxu0 0.0
  %930 = vmatpush1.msra.mxu0 0.0
  %931 = vmatprep.subr.mxu0 0.0
  %932 = vmatpush1.msra.mxu0 0.0
  %933 = vmatprep.subr.mxu0 0.0
  %934 = vmatpush1.msra.mxu0 0.0
  %935 = vmatprep.subr.mxu0 0.0
  %936 = vmatpush1.msra.mxu0 0.0
  %937 = vmatprep.subr.mxu0 0.0
  %938 = vmatpush1.msra.mxu0 0.0
  %939 = vmatprep.subr.mxu0 0.0
  %940 = vmatpush1.msra.mxu0 0.0
  %941 = vmatprep.subr.mxu0 0.0
  %942 = vmatpush1.msra.mxu0 0.0
  %943 = vmatprep.subr.mxu0 0.0
  %944 = vmatpush1.msra.mxu0 0.0
  %945 = vmatprep.subr.mxu0 0.0
  %946 = vmatpush1.msra.mxu0 0.0
  %947 = vmatprep.subr.mxu0 0.0
  %948 = vmatpush1.msra.mxu0 0.0
  %949 = vmatprep.subr.mxu0 0.0
  %950 = vmatpush1.msra.mxu0 0.0
  %951 = vmatprep.subr.mxu0 0.0
  %952 = vmatpush1.msra.mxu0 0.0
  %953 = vmatprep.subr.mxu0 0.0
  %954 = vmatpush1.msra.mxu0 0.0
  %955 = vmatprep.subr.mxu0 0.0
  %956 = vmatpush1.msra.mxu0 0.0
  %957 = vmatprep.mubr.f32.mxu0 0.0
  %958 = vmatmul.mubr.f32.gmra.mrb[0].mxu0 %v891
  %v959 = vpop.f32.mrb[0].mxu0
  %v960 = vadd.f32 0.0, %v959
  %v961 = vpop.f32.mrb[0].mxu0
  %962 = vdwg.mxu0
  %v963 = vadd.f32 %v275, %v960
  %v964 = vmul.f32 %v963, %v288
  %v965 = vtanh.pop %v964
  %v966 = vmul.f32 %v965, 0.5
  %v967 = vadd.f32 %v966, 0.5
  %v968 = vsel %vm287, %v965, %v967
  %v969 = vmul.f32 %v968, %v879
  %971 = vrot.lane.b32.xlu0 %v968, 64
  %v972 = vpop.permute.xlu0 %971
  %v974 = vmul.f32 %v968, %v972
  %976 = vrot.lane.b32.xlu0 %v974, 32
  %v977 = vpop.permute.xlu0 %976
  %v979 = vadd.f32 %v969, %v977
  %v980 = vtanh.pop %v979
  %982 = vrot.lane.b32.xlu0 %v980, 64
  %v983 = vpop.permute.xlu0 %982
  %v985 = vmul.f32 %v968, %v983
  %987 = vrot.lane.b32.xlu0 %v985, 32
  %v988 = vpop.permute.xlu0 %987
  %990 = vst.msk [vmem:[#allocation4 + $0x30] sm:$0xff] %vm289, %v988
  %v991 = vsel %vm289, %v988, 0
  %993 = vmatprep.subr.mxu0 0.0
  %994 = vmatpush1.msra.mxu0 %v57
  %995 = vmatprep.subr.mxu0 0.0
  %996 = vmatpush1.msra.mxu0 %v58
  %997 = vmatprep.subr.mxu0 0.0
  %998 = vmatpush1.msra.mxu0 %v59
  %999 = vmatprep.subr.mxu0 0.0
  %1000 = vmatpush1.msra.mxu0 %v60
  %1001 = vmatprep.subr.mxu0 0.0
  %1002 = vmatpush1.msra.mxu0 0.0
  %1003 = vmatprep.subr.mxu0 0.0
  %1004 = vmatpush1.msra.mxu0 0.0
  %1005 = vmatprep.subr.mxu0 0.0
  %1006 = vmatpush1.msra.mxu0 0.0
  %1007 = vmatprep.subr.mxu0 0.0
  %1008 = vmatpush1.msra.mxu0 0.0
  %1009 = vmatprep.subr.mxu0 0.0
  %1010 = vmatpush1.msra.mxu0 0.0
  %1011 = vmatprep.subr.mxu0 0.0
  %1012 = vmatpush1.msra.mxu0 0.0
  %1013 = vmatprep.subr.mxu0 0.0
  %1014 = vmatpush1.msra.mxu0 0.0
  %1015 = vmatprep.subr.mxu0 0.0
  %1016 = vmatpush1.msra.mxu0 0.0
  %1017 = vmatprep.subr.mxu0 0.0
  %1018 = vmatpush1.msra.mxu0 0.0
  %1019 = vmatprep.subr.mxu0 0.0
  %1020 = vmatpush1.msra.mxu0 0.0
  %1021 = vmatprep.subr.mxu0 0.0
  %1022 = vmatpush1.msra.mxu0 0.0
  %1023 = vmatprep.subr.mxu0 0.0
  %1024 = vmatpush1.msra.mxu0 0.0
  %1025 = vmatprep.subr.mxu0 0.0
  %1026 = vmatpush1.msra.mxu0 0.0
  %1027 = vmatprep.subr.mxu0 0.0
  %1028 = vmatpush1.msra.mxu0 0.0
  %1029 = vmatprep.subr.mxu0 0.0
  %1030 = vmatpush1.msra.mxu0 0.0
  %1031 = vmatprep.subr.mxu0 0.0
  %1032 = vmatpush1.msra.mxu0 0.0
  %1033 = vmatprep.subr.mxu0 0.0
  %1034 = vmatpush1.msra.mxu0 0.0
  %1035 = vmatprep.subr.mxu0 0.0
  %1036 = vmatpush1.msra.mxu0 0.0
  %1037 = vmatprep.subr.mxu0 0.0
  %1038 = vmatpush1.msra.mxu0 0.0
  %1039 = vmatprep.subr.mxu0 0.0
  %1040 = vmatpush1.msra.mxu0 0.0
  %1041 = vmatprep.subr.mxu0 0.0
  %1042 = vmatpush1.msra.mxu0 0.0
  %1043 = vmatprep.subr.mxu0 0.0
  %1044 = vmatpush1.msra.mxu0 0.0
  %1045 = vmatprep.subr.mxu0 0.0
  %1046 = vmatpush1.msra.mxu0 0.0
  %1047 = vmatprep.subr.mxu0 0.0
  %1048 = vmatpush1.msra.mxu0 0.0
  %1049 = vmatprep.subr.mxu0 0.0
  %1050 = vmatpush1.msra.mxu0 0.0
  %1051 = vmatprep.subr.mxu0 0.0
  %1052 = vmatpush1.msra.mxu0 0.0
  %1053 = vmatprep.subr.mxu0 0.0
  %1054 = vmatpush1.msra.mxu0 0.0
  %1055 = vmatprep.subr.mxu0 0.0
  %1056 = vmatpush1.msra.mxu0 0.0
  %1057 = vmatprep.mubr.f32.mxu0 0.0
  %1058 = vmatmul.mubr.f32.gmra.mrb[0].mxu0 %v991
  %v1059 = vpop.f32.mrb[0].mxu0
  %v1060 = vadd.f32 0.0, %v1059
  %v1061 = vpop.f32.mrb[0].mxu0
  %1062 = vdwg.mxu0
  %v1063 = vadd.f32 %v280, %v1060
  %v1064 = vmul.f32 %v1063, %v288
  %v1065 = vtanh.pop %v1064
  %v1066 = vmul.f32 %v1065, 0.5
  %v1067 = vadd.f32 %v1066, 0.5
  %v1068 = vsel %vm287, %v1065, %v1067
  %v1069 = vmul.f32 %v1068, %v979
  %1071 = vrot.lane.b32.xlu0 %v1068, 64
  %v1072 = vpop.permute.xlu0 %1071
  %v1074 = vmul.f32 %v1068, %v1072
  %1076 = vrot.lane.b32.xlu0 %v1074, 32
  %v1077 = vpop.permute.xlu0 %1076
  %v1079 = vadd.f32 %v1069, %v1077
  %v1080 = vtanh.pop %v1079
  %1082 = vrot.lane.b32.xlu0 %v1080, 64
  %v1083 = vpop.permute.xlu0 %1082
  %v1085 = vmul.f32 %v1068, %v1083
  %1087 = vrot.lane.b32.xlu0 %v1085, 32
  %v1088 = vpop.permute.xlu0 %1087
  %1090 = vst.msk [vmem:[#allocation4 + $0x38] sm:$0xff] %vm289, %v1088
  %v1091 = vld [vmem:[%s2 + $0x48] sm:$0xff]
  %v1092 = vld [vmem:[%s2 + $0x50] sm:$0xff]
  %v1093 = vld [vmem:[%s2 + $0x58] sm:$0xff]
  %v1094 = vld [vmem:[%s2 + $0x60] sm:$0xff]
  %v1095 = vld [vmem:[%s2 + $0x6a] sm:$0x1]
  %v1096 = vld [vmem:[#allocation4] sm:$0xff]
  %v1097 = vld [vmem:[#allocation4 + $0x8] sm:$0xff]
  %v1098 = vld [vmem:[#allocation4 + $0x10] sm:$0xff]
  %v1099 = vld [vmem:[#allocation4 + $0x18] sm:$0xff]
  %v1100 = vld [vmem:[#allocation4 + $0x20] sm:$0xff]
  %v1101 = vld [vmem:[#allocation4 + $0x28] sm:$0xff]
  %v1102 = vld [vmem:[#allocation4 + $0x30] sm:$0xff]
  %v1103 = vld [vmem:[#allocation4 + $0x38] sm:$0xff]
  %v1104 = vlaneseq
  %v1105 = vshrl.u32 %v1104, 7
  %v1106 = vsub.s32 0, %v1105
  %v1107 = vrot.slane %v1095, %v1106
  %v1109 = vsel %vm289, %v1096, 0
  %v1112 = vsel %vm289, %v1097, 0
  %v1115 = vsel %vm289, %v1098, 0
  %v1118 = vsel %vm289, %v1099, 0
  %v1121 = vsel %vm289, %v1100, 0
  %v1124 = vsel %vm289, %v1101, 0
  %v1127 = vsel %vm289, %v1102, 0
  %v1130 = vsel %vm289, %v1103, 0
  %1132 = vmatprep.subr.mxu0 0.0
  %1133 = vmatpush1.msra.mxu0 %v1091
  %1134 = vmatprep.subr.mxu0 0.0
  %1135 = vmatpush1.msra.mxu0 %v1092
  %1136 = vmatprep.subr.mxu0 0.0
  %1137 = vmatpush1.msra.mxu0 %v1093
  %1138 = vmatprep.subr.mxu0 0.0
  %1139 = vmatpush1.msra.mxu0 %v1094
  %1140 = vmatprep.subr.mxu0 0.0
  %1141 = vmatpush1.msra.mxu0 0.0
  %1142 = vmatprep.subr.mxu0 0.0
  %1143 = vmatpush1.msra.mxu0 0.0
  %1144 = vmatprep.subr.mxu0 0.0
  %1145 = vmatpush1.msra.mxu0 0.0
  %1146 = vmatprep.subr.mxu0 0.0
  %1147 = vmatpush1.msra.mxu0 0.0
  %1148 = vmatprep.subr.mxu0 0.0
  %1149 = vmatpush1.msra.mxu0 0.0
  %1150 = vmatprep.subr.mxu0 0.0
  %1151 = vmatpush1.msra.mxu0 0.0
  %1152 = vmatprep.subr.mxu0 0.0
  %1153 = vmatpush1.msra.mxu0 0.0
  %1154 = vmatprep.subr.mxu0 0.0
  %1155 = vmatpush1.msra.mxu0 0.0
  %1156 = vmatprep.subr.mxu0 0.0
  %1157 = vmatpush1.msra.mxu0 0.0
  %1158 = vmatprep.subr.mxu0 0.0
  %1159 = vmatpush1.msra.mxu0 0.0
  %1160 = vmatprep.subr.mxu0 0.0
  %1161 = vmatpush1.msra.mxu0 0.0
  %1162 = vmatprep.subr.mxu0 0.0
  %1163 = vmatpush1.msra.mxu0 0.0
  %1164 = vmatprep.subr.mxu0 0.0
  %1165 = vmatpush1.msra.mxu0 0.0
  %1166 = vmatprep.subr.mxu0 0.0
  %1167 = vmatpush1.msra.mxu0 0.0
  %1168 = vmatprep.subr.mxu0 0.0
  %1169 = vmatpush1.msra.mxu0 0.0
  %1170 = vmatprep.subr.mxu0 0.0
  %1171 = vmatpush1.msra.mxu0 0.0
  %1172 = vmatprep.subr.mxu0 0.0
  %1173 = vmatpush1.msra.mxu0 0.0
  %1174 = vmatprep.subr.mxu0 0.0
  %1175 = vmatpush1.msra.mxu0 0.0
  %1176 = vmatprep.subr.mxu0 0.0
  %1177 = vmatpush1.msra.mxu0 0.0
  %1178 = vmatprep.subr.mxu0 0.0
  %1179 = vmatpush1.msra.mxu0 0.0
  %1180 = vmatprep.subr.mxu0 0.0
  %1181 = vmatpush1.msra.mxu0 0.0
  %1182 = vmatprep.subr.mxu0 0.0
  %1183 = vmatpush1.msra.mxu0 0.0
  %1184 = vmatprep.subr.mxu0 0.0
  %1185 = vmatpush1.msra.mxu0 0.0
  %1186 = vmatprep.subr.mxu0 0.0
  %1187 = vmatpush1.msra.mxu0 0.0
  %1188 = vmatprep.subr.mxu0 0.0
  %1189 = vmatpush1.msra.mxu0 0.0
  %1190 = vmatprep.subr.mxu0 0.0
  %1191 = vmatpush1.msra.mxu0 0.0
  %1192 = vmatprep.subr.mxu0 0.0
  %1193 = vmatpush1.msra.mxu0 0.0
  %1194 = vmatprep.subr.mxu0 0.0
  %1195 = vmatpush1.msra.mxu0 0.0
  %1196 = vmatprep.mubr.f32.mxu0 0.0
  %1197 = vmatmul.mubr.f32.gmra.mrb[0].mxu0 %v1109
  %v1198 = vpop.f32.mrb[0].mxu0
  %v1199 = vadd.f32 %v1107, %v1198
  %v1200 = vpop.f32.mrb[0].mxu0
  %1201 = vmatprep.mubr.f32.mxu0 0.0
  %1202 = vmatmul.mubr.f32.gmra.mrb[0].mxu0 %v1112
  %v1203 = vpop.f32.mrb[0].mxu0
  %v1204 = vadd.f32 %v1107, %v1203
  %v1205 = vpop.f32.mrb[0].mxu0
  %1206 = vmatprep.mubr.f32.mxu0 0.0
  %1207 = vmatmul.mubr.f32.gmra.mrb[0].mxu0 %v1115
  %v1208 = vpop.f32.mrb[0].mxu0
  %v1209 = vadd.f32 %v1107, %v1208
  %v1210 = vpop.f32.mrb[0].mxu0
  %1211 = vmatprep.mubr.f32.mxu0 0.0
  %1212 = vmatmul.mubr.f32.gmra.mrb[0].mxu0 %v1118
  %v1213 = vpop.f32.mrb[0].mxu0
  %v1214 = vadd.f32 %v1107, %v1213
  %v1215 = vpop.f32.mrb[0].mxu0
  %1216 = vmatprep.mubr.f32.mxu0 0.0
  %1217 = vmatmul.mubr.f32.gmra.mrb[0].mxu0 %v1121
  %v1218 = vpop.f32.mrb[0].mxu0
  %v1219 = vadd.f32 %v1107, %v1218
  %v1220 = vpop.f32.mrb[0].mxu0
  %1221 = vmatprep.mubr.f32.mxu0 0.0
  %1222 = vmatmul.mubr.f32.gmra.mrb[0].mxu0 %v1124
  %v1223 = vpop.f32.mrb[0].mxu0
  %v1224 = vadd.f32 %v1107, %v1223
  %v1225 = vpop.f32.mrb[0].mxu0
  %1226 = vmatprep.mubr.f32.mxu0 0.0
  %1227 = vmatmul.mubr.f32.gmra.mrb[0].mxu0 %v1127
  %v1228 = vpop.f32.mrb[0].mxu0
  %v1229 = vadd.f32 %v1107, %v1228
  %v1230 = vpop.f32.mrb[0].mxu0
  %1231 = vmatprep.mubr.f32.mxu0 0.0
  %1232 = vmatmul.mubr.f32.gmra.mrb[0].mxu0 %v1130
  %v1233 = vpop.f32.mrb[0].mxu0
  %v1234 = vadd.f32 %v1107, %v1233
  %v1235 = vpop.f32.mrb[0].mxu0
  %1236 = vdwg.mxu0
  %vm1237 = vcmp.lt.s32.totalorder %v284, 5
  %vm1238 = vcmp.ge.s32.totalorder %v284, 15
  %vm1239 = vcmp.lt.s32.totalorder %v284, 25
  %vm1240 = vmand %vm1238, %vm1239
  %vm1241 = vcmp.ge.s32.totalorder %v284, 25
  %vm1242 = vcmp.lt.s32.totalorder %v284, 30
  %vm1243 = vmand %vm1241, %vm1242
  %vm1244 = vcmp.ge.s32.totalorder %v284, 30
  %vm1245 = vcmp.lt.s32.totalorder %v284, 33
  %vm1246 = vmand %vm1244, %vm1245
  %v1247 = vsel %vm1237, %v1199, -inf
  %v1248 = vsel %vm1237, %v1204, -inf
  %v1249 = vsel %vm1237, %v1209, -inf
  %v1250 = vsel %vm1237, %v1214, -inf
  %v1251 = vsel %vm1237, %v1219, -inf
  %v1252 = vsel %vm1237, %v1224, -inf
  %v1253 = vsel %vm1237, %v1229, -inf
  %v1254 = vsel %vm1237, %v1234, -inf
  %1255 = vmax.xlane.f32.xlu0 %v1247
  %v1256 = vpop.xlane.xlu0 %1255
  %1257 = vmax.xlane.f32.xlu0 %v1248
  %v1258 = vpop.xlane.xlu0 %1257
  %1259 = vmax.xlane.f32.xlu0 %v1249
  %v1260 = vpop.xlane.xlu0 %1259
  %1261 = vmax.xlane.f32.xlu0 %v1250
  %v1262 = vpop.xlane.xlu0 %1261
  %1263 = vmax.xlane.f32.xlu0 %v1251
  %v1264 = vpop.xlane.xlu0 %1263
  %1265 = vmax.xlane.f32.xlu0 %v1252
  %v1266 = vpop.xlane.xlu0 %1265
  %1267 = vmax.xlane.f32.xlu0 %v1253
  %v1268 = vpop.xlane.xlu0 %1267
  %1269 = vmax.xlane.f32.xlu0 %v1254
  %v1270 = vpop.xlane.xlu0 %1269
  %v1271 = vsel %vm1246, %v1199, -inf
  %v1272 = vsel %vm1246, %v1204, -inf
  %v1273 = vsel %vm1246, %v1209, -inf
  %v1274 = vsel %vm1246, %v1214, -inf
  %v1275 = vsel %vm1246, %v1219, -inf
  %v1276 = vsel %vm1246, %v1224, -inf
  %v1277 = vsel %vm1246, %v1229, -inf
  %v1278 = vsel %vm1246, %v1234, -inf
  %1279 = vmax.xlane.f32.xlu0 %v1271
  %v1280 = vpop.xlane.xlu0 %1279
  %1281 = vmax.xlane.f32.xlu0 %v1272
  %v1282 = vpop.xlane.xlu0 %1281
  %1283 = vmax.xlane.f32.xlu0 %v1273
  %v1284 = vpop.xlane.xlu0 %1283
  %1285 = vmax.xlane.f32.xlu0 %v1274
  %v1286 = vpop.xlane.xlu0 %1285
  %1287 = vmax.xlane.f32.xlu0 %v1275
  %v1288 = vpop.xlane.xlu0 %1287
  %1289 = vmax.xlane.f32.xlu0 %v1276
  %v1290 = vpop.xlane.xlu0 %1289
  %1291 = vmax.xlane.f32.xlu0 %v1277
  %v1292 = vpop.xlane.xlu0 %1291
  %1293 = vmax.xlane.f32.xlu0 %v1278
  %v1294 = vpop.xlane.xlu0 %1293
  %v1295 = vsel %vm1246, %v1280, 0.0
  %v1296 = vsel %vm1246, %v1282, 0.0
  %v1297 = vsel %vm1246, %v1284, 0.0
  %v1298 = vsel %vm1246, %v1286, 0.0
  %v1299 = vsel %vm1246, %v1288, 0.0
  %v1300 = vsel %vm1246, %v1290, 0.0
  %v1301 = vsel %vm1246, %v1292, 0.0
  %v1302 = vsel %vm1246, %v1294, 0.0
  %v1303 = vsel %vm1237, %v1256, %v1295
  %v1304 = vsel %vm1237, %v1258, %v1296
  %v1305 = vsel %vm1237, %v1260, %v1297
  %v1306 = vsel %vm1237, %v1262, %v1298
  %v1307 = vsel %vm1237, %v1264, %v1299
  %v1308 = vsel %vm1237, %v1266, %v1300
  %v1309 = vsel %vm1237, %v1268, %v1301
  %v1310 = vsel %vm1237, %v1270, %v1302
  %v1311 = vsub.f32 %v1199, %v1303
  %v1312 = vsub.f32 %v1204, %v1304
  %v1313 = vsub.f32 %v1209, %v1305
  %v1314 = vsub.f32 %v1214, %v1306
  %v1315 = vsub.f32 %v1219, %v1307
  %v1316 = vsub.f32 %v1224, %v1308
  %v1317 = vsub.f32 %v1229, %v1309
  %v1318 = vsub.f32 %v1234, %v1310
  %v1319 = vmul.f32 %v1311, 1.442695
  %v1320 = vpow.pop %v1319
  %v1321 = vmul.f32 %v1312, 1.442695
  %v1322 = vpow.pop %v1321
  %v1323 = vmul.f32 %v1313, 1.442695
  %v1324 = vpow.pop %v1323
  %v1325 = vmul.f32 %v1314, 1.442695
  %v1326 = vpow.pop %v1325
  %v1327 = vmul.f32 %v1315, 1.442695
  %v1328 = vpow.pop %v1327
  %v1329 = vmul.f32 %v1316, 1.442695
  %v1330 = vpow.pop %v1329
  %v1331 = vmul.f32 %v1317, 1.442695
  %v1332 = vpow.pop %v1331
  %v1333 = vmul.f32 %v1318, 1.442695
  %v1334 = vpow.pop %v1333
  %v1335 = vtanh.pop %v1199
  %v1336 = vtanh.pop %v1204
  %v1337 = vtanh.pop %v1209
  %v1338 = vtanh.pop %v1214
  %v1339 = vtanh.pop %v1219
  %v1340 = vtanh.pop %v1224
  %v1341 = vtanh.pop %v1229
  %v1342 = vtanh.pop %v1234
  %v1343 = vsel %vm1237, %v1320, 0.0
  %v1344 = vsel %vm1237, %v1322, 0.0
  %v1345 = vsel %vm1237, %v1324, 0.0
  %v1346 = vsel %vm1237, %v1326, 0.0
  %v1347 = vsel %vm1237, %v1328, 0.0
  %v1348 = vsel %vm1237, %v1330, 0.0
  %v1349 = vsel %vm1237, %v1332, 0.0
  %v1350 = vsel %vm1237, %v1334, 0.0
  %1351 = vadd.xlane.f32.xlu0 %v1343
  %v1352 = vpop.xlane.xlu0 %1351
  %1353 = vadd.xlane.f32.xlu0 %v1344
  %v1354 = vpop.xlane.xlu0 %1353
  %1355 = vadd.xlane.f32.xlu0 %v1345
  %v1356 = vpop.xlane.xlu0 %1355
  %1357 = vadd.xlane.f32.xlu0 %v1346
  %v1358 = vpop.xlane.xlu0 %1357
  %1359 = vadd.xlane.f32.xlu0 %v1347
  %v1360 = vpop.xlane.xlu0 %1359
  %1361 = vadd.xlane.f32.xlu0 %v1348
  %v1362 = vpop.xlane.xlu0 %1361
  %1363 = vadd.xlane.f32.xlu0 %v1349
  %v1364 = vpop.xlane.xlu0 %1363
  %1365 = vadd.xlane.f32.xlu0 %v1350
  %v1366 = vpop.xlane.xlu0 %1365
  %v1367 = vsel %vm1246, %v1320, 0.0
  %v1368 = vsel %vm1246, %v1322, 0.0
  %v1369 = vsel %vm1246, %v1324, 0.0
  %v1370 = vsel %vm1246, %v1326, 0.0
  %v1371 = vsel %vm1246, %v1328, 0.0
  %v1372 = vsel %vm1246, %v1330, 0.0
  %v1373 = vsel %vm1246, %v1332, 0.0
  %v1374 = vsel %vm1246, %v1334, 0.0
  %1375 = vadd.xlane.f32.xlu0 %v1367
  %v1376 = vpop.xlane.xlu0 %1375
  %1377 = vadd.xlane.f32.xlu0 %v1368
  %v1378 = vpop.xlane.xlu0 %1377
  %1379 = vadd.xlane.f32.xlu0 %v1369
  %v1380 = vpop.xlane.xlu0 %1379
  %1381 = vadd.xlane.f32.xlu0 %v1370
  %v1382 = vpop.xlane.xlu0 %1381
  %1383 = vadd.xlane.f32.xlu0 %v1371
  %v1384 = vpop.xlane.xlu0 %1383
  %1385 = vadd.xlane.f32.xlu0 %v1372
  %v1386 = vpop.xlane.xlu0 %1385
  %1387 = vadd.xlane.f32.xlu0 %v1373
  %v1388 = vpop.xlane.xlu0 %1387
  %1389 = vadd.xlane.f32.xlu0 %v1374
  %v1390 = vpop.xlane.xlu0 %1389
  %v1391 = vsel %vm1240, %v1320, %v1199
  %v1392 = vsel %vm1240, %v1322, %v1204
  %v1393 = vsel %vm1240, %v1324, %v1209
  %v1394 = vsel %vm1240, %v1326, %v1214
  %v1395 = vsel %vm1240, %v1328, %v1219
  %v1396 = vsel %vm1240, %v1330, %v1224
  %v1397 = vsel %vm1240, %v1332, %v1229
  %v1398 = vsel %vm1240, %v1334, %v1234
  %v1399 = vsel %vm1243, %v1335, %v1391
  %v1400 = vsel %vm1243, %v1336, %v1392
  %v1401 = vsel %vm1243, %v1337, %v1393
  %v1402 = vsel %vm1243, %v1338, %v1394
  %v1403 = vsel %vm1243, %v1339, %v1395
  %v1404 = vsel %vm1243, %v1340, %v1396
  %v1405 = vsel %vm1243, %v1341, %v1397
  %v1406 = vsel %vm1243, %v1342, %v1398
  %v1407 = vrcp.pop %v1352
  %v1408 = vrcp.pop %v1354
  %v1409 = vrcp.pop %v1356
  %v1410 = vrcp.pop %v1358
  %v1411 = vrcp.pop %v1360
  %v1412 = vrcp.pop %v1362
  %v1413 = vrcp.pop %v1364
  %v1414 = vrcp.pop %v1366
  %v1415 = vmul.f32 %v1320, %v1407
  %v1416 = vmul.f32 %v1322, %v1408
  %v1417 = vmul.f32 %v1324, %v1409
  %v1418 = vmul.f32 %v1326, %v1410
  %v1419 = vmul.f32 %v1328, %v1411
  %v1420 = vmul.f32 %v1330, %v1412
  %v1421 = vmul.f32 %v1332, %v1413
  %v1422 = vmul.f32 %v1334, %v1414
  %v1423 = vsel %vm1237, %v1415, %v1399
  %v1424 = vsel %vm1237, %v1416, %v1400
  %v1425 = vsel %vm1237, %v1417, %v1401
  %v1426 = vsel %vm1237, %v1418, %v1402
  %v1427 = vsel %vm1237, %v1419, %v1403
  %v1428 = vsel %vm1237, %v1420, %v1404
  %v1429 = vsel %vm1237, %v1421, %v1405
  %v1430 = vsel %vm1237, %v1422, %v1406
  %v1431 = vrcp.pop %v1376
  %v1432 = vrcp.pop %v1378
  %v1433 = vrcp.pop %v1380
  %v1434 = vrcp.pop %v1382
  %v1435 = vrcp.pop %v1384
  %v1436 = vrcp.pop %v1386
  %v1437 = vrcp.pop %v1388
  %v1438 = vrcp.pop %v1390
  %v1439 = vmul.f32 %v1320, %v1431
  %v1440 = vmul.f32 %v1322, %v1432
  %v1441 = vmul.f32 %v1324, %v1433
  %v1442 = vmul.f32 %v1326, %v1434
  %v1443 = vmul.f32 %v1328, %v1435
  %v1444 = vmul.f32 %v1330, %v1436
  %v1445 = vmul.f32 %v1332, %v1437
  %v1446 = vmul.f32 %v1334, %v1438
  %v1447 = vsel %vm1246, %v1439, %v1423
  %v1448 = vsel %vm1246, %v1440, %v1424
  %v1449 = vsel %vm1246, %v1441, %v1425
  %v1450 = vsel %vm1246, %v1442, %v1426
  %v1451 = vsel %vm1246, %v1443, %v1427
  %v1452 = vsel %vm1246, %v1444, %v1428
  %v1453 = vsel %vm1246, %v1445, %v1429
  %v1454 = vsel %vm1246, %v1446, %v1430
  %1455 = vst [vmem:[%s3] sm:$0xff] %v1447
  %1456 = vst [vmem:[%s3 + $0x8] sm:$0xff] %v1448
  %1457 = vst [vmem:[%s3 + $0x10] sm:$0xff] %v1449
  %1458 = vst [vmem:[%s3 + $0x18] sm:$0xff] %v1450
  %1459 = vst [vmem:[%s3 + $0x20] sm:$0xff] %v1451
  %1460 = vst [vmem:[%s3 + $0x28] sm:$0xff] %v1452
  %1461 = vst [vmem:[%s3 + $0x30] sm:$0xff] %v1453
  %1462 = vst [vmem:[%s3 + $0x38] sm:$0xff] %v1454
  // Predicated region
  $region14: #{decoder_forward.1} parent=0 // pred_check
    _
  $region15: #{decoder_forward.1} parent=0 // pred_check_branch
    %1464 = sbr.rel (0) target = $region17
  $region16: #{decoder_forward.1} parent=0 // pred_region
    _
  $region17: #{decoder_forward.1} parent=0 // pred_fallthru
    _
  // Predicated region
  $region18: #{decoder_forward.1} parent=0 // pred_check
    _
  $region19: #{decoder_forward.1} parent=0 // pred_check_branch
    %1466 = sbr.rel (0) target = $region21
  $region20: #{decoder_forward.1} parent=0 // pred_region
    _
  $region21: #{decoder_forward.1} parent=0 // pred_fallthru
    _

</llo_original>
